<compile_context>
chip_gen: v7x
topology: tpu7x:2x2x1
jax: 0.10.0
libtpu: 0.0.40
codegen_flags: <defaults>
</compile_context>

<pallas_src>
import functools

import numpy as np

import jax
import jax.numpy as jnp
from jax import lax
from jax.experimental import pallas as pl
from jax.experimental.pallas import tpu as pltpu


# ----------------------- fused GATConv (+ optional BN/ELU) ------------------- #

def _gat_layer_kernel(*refs, heads, out_per_head, negative_slope, fuse_bn_elu, eps):
    """One invocation == one full GATConv layer (all heads).

    refs (in order):
      xs    : (N_src, F_in)   source-node features
      xd    : (N_dst, F_in)   target-node features (x[:size[1]])
      adj   : (N_dst, N_src)  dense {0,1} mask, adj[i, j] = 1 iff edge j -> i
      w     : (F_in, H*C)     all heads' lin weights stacked along lanes
      att_s : (1, H*C)        attention vectors (src), heads stacked
      att_d : (1, H*C)        attention vectors (dst), heads stacked
      bias  : (1, H*C)        GATConv bias, heads stacked
      [gamma, beta : (1, H*C)]  only when fuse_bn_elu
      out   : (N_dst, H*C)    concatenated-head output (PyG concat=True layout)
    """
    if fuse_bn_elu:
        (xs_ref, xd_ref, adj_ref, w_ref, att_s_ref, att_d_ref, b_ref,
         gamma_ref, beta_ref, out_ref) = refs
    else:
        (xs_ref, xd_ref, adj_ref, w_ref, att_s_ref, att_d_ref, b_ref,
         out_ref) = refs
        gamma_ref = beta_ref = None

    xs = xs_ref[...]
    xd = xd_ref[...]
    adj = adj_ref[...]
    w = w_ref[...]
    att_s = att_s_ref[...]
    att_d = att_d_ref[...]
    bias = b_ref[...]

    # Single lane-dense projection for ALL heads (reads xs/xd once, N = H*C
    # lanes on the MXU).  Shared src/dst weight as in PyG GATConv with integer
    # in_channels.
    hs_all = jnp.dot(xs, w, preferred_element_type=jnp.float32)   # (N_src, H*C)
    hd_all = jnp.dot(xd, w, preferred_element_type=jnp.float32)   # (N_dst, H*C)

    neg = jnp.float32(negative_slope)
    for h in range(heads):                       # static unroll; heads is small
        sl = slice(h * out_per_head, (h + 1) * out_per_head)
        hs = hs_all[:, sl]                       # (N_src, C)
        hd = hd_all[:, sl]                       # (N_dst, C)

        # alpha_dst[i] = <hd[i], att_d_h>  -> column (lane reduction, XLU).
        a_dst = jnp.sum(hd * att_d[:, sl], axis=-1, keepdims=True)      # (N_dst, 1)

        # alpha_src[j] = <hs[j], att_s_h>  directly as a ROW via a tiny MXU
        # contraction (8 padded rows), NOT a rank-1 (N_dst, N_src) matmul.
        att_s_rows = jnp.broadcast_to(att_s[:, sl], (8, out_per_head))
        a_src = lax.dot_general(
            att_s_rows, hs,
            dimension_numbers=(((1,), (1,)), ((), ())),
            preferred_element_type=jnp.float32)[0:1, :]                 # (1, N_src)

        # e_ij = LeakyReLU(alpha_dst[i] + alpha_src[j]); masked softmax over j.
        e = a_dst + a_src                                               # (N_dst, N_src)
        e = jnp.where(e >= 0, e, neg * e)
        e = jnp.where(adj > 0, e, jnp.float32(-1e30))
        e_max = jnp.max(e, axis=-1, keepdims=True)
        p = jnp.exp(e - e_max) * adj                                    # exact zeros off-graph
        denom = jnp.sum(p, axis=-1, keepdims=True)
        denom = jnp.where(denom > 0, denom, jnp.float32(1.0))           # edgeless rows -> 0
        attn = p * pl.reciprocal(denom, approx=True)                    # EUP, not VALU divide

        # Neighbor aggregation on the MXU; write this head's slot of the
        # concatenated output (VMEM-local slice store).
        out_h = jnp.dot(attn, hs, preferred_element_type=jnp.float32)  # (N_dst, C)
        out_ref[:, sl] = out_h + bias[:, sl]

    if fuse_bn_elu:
        # BatchNorm1d (training-mode batch statistics) + ELU fused into the
        # epilogue: the activation never round-trips HBM before the norm.
        out = out_ref[...]                                              # (N_dst, H*C)
        mean = jnp.mean(out, axis=0, keepdims=True)
        var = jnp.mean(jnp.square(out - mean), axis=0, keepdims=True)
        y = (out - mean) * lax.rsqrt(var + jnp.float32(eps))
        y = y * gamma_ref[...] + beta_ref[...]
        out_ref[...] = jnp.where(y > 0, y, jnp.exp(jnp.minimum(y, 0.0)) - 1.0)


def gat_conv(x_src, x_dst, adj, w, att_src, att_dst, bias, *, negative_slope=0.2,
             bn_gamma=None, bn_beta=None, bn_eps=1e-5):
    """Dense-mask GATConv (all heads fused in one pallas_call).

    w: (H, F_in, C); att_*: (H, 1, C); bias: (H, 1, C).
    Returns (N_dst, H*C) — heads concatenated (PyG concat=True).  If
    bn_gamma/bn_beta are given, BatchNorm1d(batch stats)+ELU are fused in.
    """
    H, F_in, C = w.shape
    N_dst = x_dst.shape[0]
    fuse = bn_gamma is not None

    # Stack heads along lanes wrapper-side (one-off, tiny):
    #   (H, F_in, C) -> (F_in, H*C);  (H, 1, C) -> (1, H*C)
    w_all = jnp.transpose(w, (1, 0, 2)).reshape(F_in, H * C)
    att_s_all = att_src.reshape(1, H * C)
    att_d_all = att_dst.reshape(1, H * C)
    bias_all = bias.reshape(1, H * C)

    args = [x_src, x_dst, adj, w_all, att_s_all, att_d_all, bias_all]
    if fuse:
        args += [bn_gamma.reshape(1, H * C), bn_beta.reshape(1, H * C)]

    kernel = functools.partial(
        _gat_layer_kernel, heads=H, out_per_head=C,
        negative_slope=negative_slope, fuse_bn_elu=fuse, eps=bn_eps)

    # grid=(): single invocation, full arrays in VMEM, one lane-dense
    # (N_dst, H*C) output slab.  (For large graphs: tile N_dst as a 'parallel'
    # grid axis and N_src with an online softmax.)
    return pl.pallas_call(
        kernel,
        out_shape=jax.ShapeDtypeStruct((N_dst, H * C), jnp.float32),
        compiler_params=pltpu.CompilerParams(vmem_limit_bytes=32 * 1024 * 1024),
    )(*args)


# ------------------------------ GAT forward ---------------------------------- #

def gat_forward(x, adjs, params):
    """JAX/Pallas equivalent of GAT.forward.

    adjs: list of (adj_mask, size) with adj_mask (N_dst, N_src) float {0,1}
          and size = (N_src, N_dst), mirroring NeighborSampler's adjs.
    """
    for i, (adj, size) in enumerate(adjs):
        x_target = x[: size[1]]
        lp = params["layers"][i]
        if i == 0:
            x = gat_conv(x, x_target, adj, lp["w"], lp["att_src"], lp["att_dst"],
                         lp["bias"],
                         bn_gamma=params["norm"]["gamma"],
                         bn_beta=params["norm"]["beta"])
            # TODO(synk): F.dropout(training=True) omitted -> identity.
        else:
            x = gat_conv(x, x_target, adj, lp["w"], lp["att_src"], lp["att_dst"],
                         lp["bias"])
    return x


# --------------------------- pure-JAX reference ------------------------------ #

def _ref_gat_conv(x_src, x_dst, adj, w, att_src, att_dst, bias, negative_slope=0.2):
    H, F_in, C = w.shape
    hs = jnp.einsum("nf,hfc->nhc", x_src, w)                     # (N_src, H, C)
    hd = jnp.einsum("nf,hfc->nhc", x_dst, w)                     # (N_dst, H, C)
    a_s = jnp.sum(hs * att_src[None, :, 0, :], axis=-1)          # (N_src, H)
    a_d = jnp.sum(hd * att_dst[None, :, 0, :], axis=-1)          # (N_dst, H)
    e = a_d[:, :, None] + jnp.swapaxes(a_s, 0, 1)[None, :, :]    # (N_dst, H, N_src)
    e = jnp.where(e >= 0, e, negative_slope * e)
    mask = (adj > 0)[:, None, :]
    e = jnp.where(mask, e, -1e30)
    e_max = jnp.max(e, axis=-1, keepdims=True)
    p = jnp.exp(e - e_max) * mask.astype(jnp.float32)
    denom = jnp.maximum(jnp.sum(p, axis=-1, keepdims=True), 1e-30)
    attn = p / denom
    out = jnp.einsum("dhs,shc->dhc", attn, hs) + bias[None, :, 0, :]
    return out.reshape(x_dst.shape[0], H * C)


def _ref_gat_forward(x, adjs, params):
    for i, (adj, size) in enumerate(adjs):
        x_t = x[: size[1]]
        lp = params["layers"][i]
        x = _ref_gat_conv(x, x_t, adj, lp["w"], lp["att_src"], lp["att_dst"], lp["bias"])
        if i == 0:
            g = params["norm"]["gamma"].reshape(1, -1)
            b = params["norm"]["beta"].reshape(1, -1)
            mean = jnp.mean(x, axis=0, keepdims=True)
            var = jnp.mean(jnp.square(x - mean), axis=0, keepdims=True)
            y = (x - mean) * lax.rsqrt(var + 1e-5) * g + b
            x = jnp.where(y > 0, y, jnp.exp(jnp.minimum(y, 0.0)) - 1.0)
    return x


# ---------------------------------- main -------------------------------------- #

if __name__ == "__main__":
    key = jax.random.PRNGKey(0)
    keys = jax.random.split(key, 12)

    in_dim, hid_dim, out_dim, heads = 32, 16, 16, 4
    n_src1, n_dst1, n_dst2 = 32, 16, 8          # mini-batch bipartite block sizes

    x = jax.random.normal(keys[0], (n_src1, in_dim), dtype=jnp.float32)

    def glorot(k, shape, fan_in, fan_out):
        s = float(np.sqrt(6.0 / (fan_in + fan_out)))
        return jax.random.uniform(k, shape, jnp.float32, -s, s)

    params = {
        "layers": [
            {   # GAT1: in_dim -> hid_dim, heads
                "w": glorot(keys[1], (heads, in_dim, hid_dim), in_dim, heads * hid_dim),
                "att_src": glorot(keys[2], (heads, 1, hid_dim), hid_dim, 1),
                "att_dst": glorot(keys[3], (heads, 1, hid_dim), hid_dim, 1),
                "bias": 0.1 * jax.random.normal(keys[4], (heads, 1, hid_dim), jnp.float32),
            },
            {   # GAT2: hid_dim*heads -> out_dim, 1 head
                "w": glorot(keys[5], (1, heads * hid_dim, out_dim), heads * hid_dim, out_dim),
                "att_src": glorot(keys[6], (1, 1, out_dim), out_dim, 1),
                "att_dst": glorot(keys[7], (1, 1, out_dim), out_dim, 1),
                "bias": 0.1 * jax.random.normal(keys[8], (1, 1, out_dim), jnp.float32),
            },
        ],
        "norm": {
            "gamma": 1.0 + 0.1 * jax.random.normal(keys[9], (heads * hid_dim,), jnp.float32),
            "beta": 0.1 * jax.random.normal(keys[10], (heads * hid_dim,), jnp.float32),
        },
    }

    # NeighborSampler-style adjs, converted to dense {0,1} masks (dst x src).
    rng = np.random.default_rng(0)

    def dense_adj(n_src, n_dst, k):
        adj = np.zeros((n_dst, n_src), dtype=np.float32)
        for d in range(n_dst):
            for s in rng.choice(n_src, size=k, replace=False):
                adj[d, s] = 1.0
        return jnp.asarray(adj)

    adjs = [
        (dense_adj(n_src1, n_dst1, 4), (n_src1, n_dst1)),   # layer-1 block
        (dense_adj(n_dst1, n_dst2, 3), (n_dst1, n_dst2)),   # layer-2 block
    ]

    out = gat_forward(x, adjs, params)
    out = jax.block_until_ready(out)

    ref = _ref_gat_forward(x, adjs, params)
    assert out.shape == (n_dst2, out_dim), out.shape
    np.testing.assert_allclose(np.asarray(out), np.asarray(ref), rtol=5e-2, atol=5e-2)
    print("KERNEL_OK")
</pallas_src>

<mosaic_0001>
module attributes {stable_mosaic.version = 11 : i64} {
  func.func @_gat_layer_kernel(%arg0: memref<32x32xf32, #tpu.memory_space<vmem>>, %arg1: memref<16x32xf32, #tpu.memory_space<vmem>>, %arg2: memref<16x32xf32, #tpu.memory_space<vmem>>, %arg3: memref<32x64xf32, #tpu.memory_space<vmem>>, %arg4: memref<1x64xf32, #tpu.memory_space<vmem>>, %arg5: memref<1x64xf32, #tpu.memory_space<vmem>>, %arg6: memref<1x64xf32, #tpu.memory_space<vmem>>, %arg7: memref<1x64xf32, #tpu.memory_space<vmem>>, %arg8: memref<1x64xf32, #tpu.memory_space<vmem>>, %arg9: memref<16x64xf32, #tpu.memory_space<vmem>>) attributes {dimension_semantics = [], scalar_prefetch = 0 : i64, scratch_operands = 0 : i64, tpu.core_type = #tpu.core_type<tc>} {
    %c0 = arith.constant 0 : index
    %c0_0 = arith.constant 0 : index
    %0 = vector.load %arg0[%c0, %c0_0] : memref<32x32xf32, #tpu.memory_space<vmem>>, vector<32x32xf32>
    %c0_1 = arith.constant 0 : index
    %c0_2 = arith.constant 0 : index
    %1 = vector.load %arg1[%c0_1, %c0_2] : memref<16x32xf32, #tpu.memory_space<vmem>>, vector<16x32xf32>
    %c0_3 = arith.constant 0 : index
    %c0_4 = arith.constant 0 : index
    %2 = vector.load %arg2[%c0_3, %c0_4] : memref<16x32xf32, #tpu.memory_space<vmem>>, vector<16x32xf32>
    %c0_5 = arith.constant 0 : index
    %c0_6 = arith.constant 0 : index
    %3 = vector.load %arg3[%c0_5, %c0_6] : memref<32x64xf32, #tpu.memory_space<vmem>>, vector<32x64xf32>
    %c0_7 = arith.constant 0 : index
    %c0_8 = arith.constant 0 : index
    %4 = vector.load %arg4[%c0_7, %c0_8] : memref<1x64xf32, #tpu.memory_space<vmem>>, vector<1x64xf32>
    %c0_9 = arith.constant 0 : index
    %c0_10 = arith.constant 0 : index
    %5 = vector.load %arg5[%c0_9, %c0_10] : memref<1x64xf32, #tpu.memory_space<vmem>>, vector<1x64xf32>
    %c0_11 = arith.constant 0 : index
    %c0_12 = arith.constant 0 : index
    %6 = vector.load %arg6[%c0_11, %c0_12] : memref<1x64xf32, #tpu.memory_space<vmem>>, vector<1x64xf32>
    %cst = arith.constant dense<0.000000e+00> : vector<32x64xf32>
    %7 = tpu.matmul %0, %3, %cst {dimension_numbers = #tpu.dot_dimension_numbers<[1], [0], [0], [1], [0, 0, 1, 1], [], []>} : vector<32x32xf32>, vector<32x64xf32>, vector<32x64xf32> -> vector<32x64xf32>
    %cst_13 = arith.constant dense<0.000000e+00> : vector<16x64xf32>
    %8 = tpu.matmul %1, %3, %cst_13 {dimension_numbers = #tpu.dot_dimension_numbers<[1], [0], [0], [1], [0, 0, 1, 1], [], []>} : vector<16x32xf32>, vector<32x64xf32>, vector<16x64xf32> -> vector<16x64xf32>
    %9 = vector.extract_strided_slice %7 {offsets = [0, 0], sizes = [32, 16], strides = [1, 1]} : vector<32x64xf32> to vector<32x16xf32>
    %10 = vector.extract_strided_slice %8 {offsets = [0, 0], sizes = [16, 16], strides = [1, 1]} : vector<16x64xf32> to vector<16x16xf32>
    %11 = vector.extract_strided_slice %5 {offsets = [0, 0], sizes = [1, 16], strides = [1, 1]} : vector<1x64xf32> to vector<1x16xf32>
    %12 = vector.broadcast %11 : vector<1x16xf32> to vector<16x16xf32>
    %13 = arith.mulf %10, %12 : vector<16x16xf32>
    %cst_14 = arith.constant dense<0.000000e+00> : vector<16xf32>
    %14 = vector.multi_reduction <add>, %13, %cst_14 [1] : vector<16x16xf32> to vector<16xf32>
    %15 = vector.shape_cast %14 : vector<16xf32> to vector<16x1xf32>
    %16 = vector.extract_strided_slice %4 {offsets = [0, 0], sizes = [1, 16], strides = [1, 1]} : vector<1x64xf32> to vector<1x16xf32>
    %17 = vector.shape_cast %16 : vector<1x16xf32> to vector<1x16xf32>
    %18 = vector.broadcast %17 : vector<1x16xf32> to vector<8x16xf32>
    %cst_15 = arith.constant dense<0.000000e+00> : vector<8x32xf32>
    %19 = tpu.matmul %18, %9, %cst_15 {dimension_numbers = #tpu.dot_dimension_numbers<[1], [1], [0], [0], [0, 0, 1, 0], [], []>} : vector<8x16xf32>, vector<32x16xf32>, vector<8x32xf32> -> vector<8x32xf32>
    %20 = vector.extract_strided_slice %19 {offsets = [0, 0], sizes = [1, 32], strides = [1, 1]} : vector<8x32xf32> to vector<1x32xf32>
    %21 = vector.broadcast %15 : vector<16x1xf32> to vector<16x32xf32>
    %22 = vector.broadcast %20 : vector<1x32xf32> to vector<16x32xf32>
    %23 = arith.addf %21, %22 : vector<16x32xf32>
    %cst_16 = arith.constant 0.000000e+00 : f32
    %24 = vector.broadcast %cst_16 : f32 to vector<16x32xf32>
    %25 = arith.cmpf oge, %23, %24 : vector<16x32xf32>
    %cst_17 = arith.constant 2.000000e-01 : f32
    %26 = vector.broadcast %cst_17 : f32 to vector<16x32xf32>
    %27 = arith.mulf %26, %23 : vector<16x32xf32>
    %28 = arith.select %25, %23, %27 : vector<16x32xi1>, vector<16x32xf32>
    %cst_18 = arith.constant 0.000000e+00 : f32
    %29 = vector.broadcast %cst_18 : f32 to vector<16x32xf32>
    %30 = arith.cmpf ogt, %2, %29 : vector<16x32xf32>
    %cst_19 = arith.constant -1.000000e+30 : f32
    %31 = vector.broadcast %cst_19 : f32 to vector<16x32xf32>
    %32 = arith.select %30, %28, %31 : vector<16x32xi1>, vector<16x32xf32>
    %cst_20 = arith.constant dense<0xFF800000> : vector<16xf32>
    %33 = vector.multi_reduction <maximumf>, %32, %cst_20 [1] : vector<16x32xf32> to vector<16xf32>
    %34 = vector.shape_cast %33 : vector<16xf32> to vector<16x1xf32>
    %35 = vector.broadcast %34 : vector<16x1xf32> to vector<16x32xf32>
    %36 = arith.subf %32, %35 : vector<16x32xf32>
    %37 = math.exp %36 : vector<16x32xf32>
    %38 = arith.mulf %37, %2 : vector<16x32xf32>
    %cst_21 = arith.constant dense<0.000000e+00> : vector<16xf32>
    %39 = vector.multi_reduction <add>, %38, %cst_21 [1] : vector<16x32xf32> to vector<16xf32>
    %40 = vector.shape_cast %39 : vector<16xf32> to vector<16x1xf32>
    %cst_22 = arith.constant 0.000000e+00 : f32
    %41 = vector.broadcast %cst_22 : f32 to vector<16x1xf32>
    %42 = arith.cmpf ogt, %40, %41 : vector<16x1xf32>
    %cst_23 = arith.constant 1.000000e+00 : f32
    %43 = vector.broadcast %cst_23 : f32 to vector<16x1xf32>
    %44 = arith.select %42, %40, %43 : vector<16x1xi1>, vector<16x1xf32>
    %45 = tpu.reciprocal %44 {approx = true} : vector<16x1xf32> -> vector<16x1xf32>
    %46 = vector.broadcast %45 : vector<16x1xf32> to vector<16x32xf32>
    %47 = arith.mulf %38, %46 : vector<16x32xf32>
    %cst_24 = arith.constant dense<0.000000e+00> : vector<16x16xf32>
    %48 = tpu.matmul %47, %9, %cst_24 {dimension_numbers = #tpu.dot_dimension_numbers<[1], [0], [0], [1], [0, 0, 1, 1], [], []>} : vector<16x32xf32>, vector<32x16xf32>, vector<16x16xf32> -> vector<16x16xf32>
    %49 = vector.extract_strided_slice %6 {offsets = [0, 0], sizes = [1, 16], strides = [1, 1]} : vector<1x64xf32> to vector<1x16xf32>
    %50 = vector.broadcast %49 : vector<1x16xf32> to vector<16x16xf32>
    %51 = arith.addf %48, %50 : vector<16x16xf32>
    %c0_25 = arith.constant 0 : index
    %c0_26 = arith.constant 0 : index
    %52 = vector.load %arg9[%c0_25, %c0_26] : memref<16x64xf32, #tpu.memory_space<vmem>>, vector<16x16xf32>
    tpu.vector_store %arg9[%c0_25, %c0_26], %51 {strides = array<i32>} : memref<16x64xf32, #tpu.memory_space<vmem>>, vector<16x16xf32>,
    %53 = vector.extract_strided_slice %7 {offsets = [0, 16], sizes = [32, 16], strides = [1, 1]} : vector<32x64xf32> to vector<32x16xf32>
    %54 = vector.extract_strided_slice %8 {offsets = [0, 16], sizes = [16, 16], strides = [1, 1]} : vector<16x64xf32> to vector<16x16xf32>
    %55 = vector.extract_strided_slice %5 {offsets = [0, 16], sizes = [1, 16], strides = [1, 1]} : vector<1x64xf32> to vector<1x16xf32>
    %56 = vector.broadcast %55 : vector<1x16xf32> to vector<16x16xf32>
    %57 = arith.mulf %54, %56 : vector<16x16xf32>
    %cst_27 = arith.constant dense<0.000000e+00> : vector<16xf32>
    %58 = vector.multi_reduction <add>, %57, %cst_27 [1] : vector<16x16xf32> to vector<16xf32>
    %59 = vector.shape_cast %58 : vector<16xf32> to vector<16x1xf32>
    %60 = vector.extract_strided_slice %4 {offsets = [0, 16], sizes = [1, 16], strides = [1, 1]} : vector<1x64xf32> to vector<1x16xf32>
    %61 = vector.shape_cast %60 : vector<1x16xf32> to vector<1x16xf32>
    %62 = vector.broadcast %61 : vector<1x16xf32> to vector<8x16xf32>
    %cst_28 = arith.constant dense<0.000000e+00> : vector<8x32xf32>
    %63 = tpu.matmul %62, %53, %cst_28 {dimension_numbers = #tpu.dot_dimension_numbers<[1], [1], [0], [0], [0, 0, 1, 0], [], []>} : vector<8x16xf32>, vector<32x16xf32>, vector<8x32xf32> -> vector<8x32xf32>
    %64 = vector.extract_strided_slice %63 {offsets = [0, 0], sizes = [1, 32], strides = [1, 1]} : vector<8x32xf32> to vector<1x32xf32>
    %65 = vector.broadcast %59 : vector<16x1xf32> to vector<16x32xf32>
    %66 = vector.broadcast %64 : vector<1x32xf32> to vector<16x32xf32>
    %67 = arith.addf %65, %66 : vector<16x32xf32>
    %cst_29 = arith.constant 0.000000e+00 : f32
    %68 = vector.broadcast %cst_29 : f32 to vector<16x32xf32>
    %69 = arith.cmpf oge, %67, %68 : vector<16x32xf32>
    %cst_30 = arith.constant 2.000000e-01 : f32
    %70 = vector.broadcast %cst_30 : f32 to vector<16x32xf32>
    %71 = arith.mulf %70, %67 : vector<16x32xf32>
    %72 = arith.select %69, %67, %71 : vector<16x32xi1>, vector<16x32xf32>
    %cst_31 = arith.constant 0.000000e+00 : f32
    %73 = vector.broadcast %cst_31 : f32 to vector<16x32xf32>
    %74 = arith.cmpf ogt, %2, %73 : vector<16x32xf32>
    %cst_32 = arith.constant -1.000000e+30 : f32
    %75 = vector.broadcast %cst_32 : f32 to vector<16x32xf32>
    %76 = arith.select %74, %72, %75 : vector<16x32xi1>, vector<16x32xf32>
    %cst_33 = arith.constant dense<0xFF800000> : vector<16xf32>
    %77 = vector.multi_reduction <maximumf>, %76, %cst_33 [1] : vector<16x32xf32> to vector<16xf32>
    %78 = vector.shape_cast %77 : vector<16xf32> to vector<16x1xf32>
    %79 = vector.broadcast %78 : vector<16x1xf32> to vector<16x32xf32>
    %80 = arith.subf %76, %79 : vector<16x32xf32>
    %81 = math.exp %80 : vector<16x32xf32>
    %82 = arith.mulf %81, %2 : vector<16x32xf32>
    %cst_34 = arith.constant dense<0.000000e+00> : vector<16xf32>
    %83 = vector.multi_reduction <add>, %82, %cst_34 [1] : vector<16x32xf32> to vector<16xf32>
    %84 = vector.shape_cast %83 : vector<16xf32> to vector<16x1xf32>
    %cst_35 = arith.constant 0.000000e+00 : f32
    %85 = vector.broadcast %cst_35 : f32 to vector<16x1xf32>
    %86 = arith.cmpf ogt, %84, %85 : vector<16x1xf32>
    %cst_36 = arith.constant 1.000000e+00 : f32
    %87 = vector.broadcast %cst_36 : f32 to vector<16x1xf32>
    %88 = arith.select %86, %84, %87 : vector<16x1xi1>, vector<16x1xf32>
    %89 = tpu.reciprocal %88 {approx = true} : vector<16x1xf32> -> vector<16x1xf32>
    %90 = vector.broadcast %89 : vector<16x1xf32> to vector<16x32xf32>
    %91 = arith.mulf %82, %90 : vector<16x32xf32>
    %cst_37 = arith.constant dense<0.000000e+00> : vector<16x16xf32>
    %92 = tpu.matmul %91, %53, %cst_37 {dimension_numbers = #tpu.dot_dimension_numbers<[1], [0], [0], [1], [0, 0, 1, 1], [], []>} : vector<16x32xf32>, vector<32x16xf32>, vector<16x16xf32> -> vector<16x16xf32>
    %93 = vector.extract_strided_slice %6 {offsets = [0, 16], sizes = [1, 16], strides = [1, 1]} : vector<1x64xf32> to vector<1x16xf32>
    %94 = vector.broadcast %93 : vector<1x16xf32> to vector<16x16xf32>
    %95 = arith.addf %92, %94 : vector<16x16xf32>
    %c0_38 = arith.constant 0 : index
    %c16 = arith.constant 16 : index
    %96 = vector.load %arg9[%c0_38, %c16] : memref<16x64xf32, #tpu.memory_space<vmem>>, vector<16x16xf32>
    tpu.vector_store %arg9[%c0_38, %c16], %95 {strides = array<i32>} : memref<16x64xf32, #tpu.memory_space<vmem>>, vector<16x16xf32>,
    %97 = vector.extract_strided_slice %7 {offsets = [0, 32], sizes = [32, 16], strides = [1, 1]} : vector<32x64xf32> to vector<32x16xf32>
    %98 = vector.extract_strided_slice %8 {offsets = [0, 32], sizes = [16, 16], strides = [1, 1]} : vector<16x64xf32> to vector<16x16xf32>
    %99 = vector.extract_strided_slice %5 {offsets = [0, 32], sizes = [1, 16], strides = [1, 1]} : vector<1x64xf32> to vector<1x16xf32>
    %100 = vector.broadcast %99 : vector<1x16xf32> to vector<16x16xf32>
    %101 = arith.mulf %98, %100 : vector<16x16xf32>
    %cst_39 = arith.constant dense<0.000000e+00> : vector<16xf32>
    %102 = vector.multi_reduction <add>, %101, %cst_39 [1] : vector<16x16xf32> to vector<16xf32>
    %103 = vector.shape_cast %102 : vector<16xf32> to vector<16x1xf32>
    %104 = vector.extract_strided_slice %4 {offsets = [0, 32], sizes = [1, 16], strides = [1, 1]} : vector<1x64xf32> to vector<1x16xf32>
    %105 = vector.shape_cast %104 : vector<1x16xf32> to vector<1x16xf32>
    %106 = vector.broadcast %105 : vector<1x16xf32> to vector<8x16xf32>
    %cst_40 = arith.constant dense<0.000000e+00> : vector<8x32xf32>
    %107 = tpu.matmul %106, %97, %cst_40 {dimension_numbers = #tpu.dot_dimension_numbers<[1], [1], [0], [0], [0, 0, 1, 0], [], []>} : vector<8x16xf32>, vector<32x16xf32>, vector<8x32xf32> -> vector<8x32xf32>
    %108 = vector.extract_strided_slice %107 {offsets = [0, 0], sizes = [1, 32], strides = [1, 1]} : vector<8x32xf32> to vector<1x32xf32>
    %109 = vector.broadcast %103 : vector<16x1xf32> to vector<16x32xf32>
    %110 = vector.broadcast %108 : vector<1x32xf32> to vector<16x32xf32>
    %111 = arith.addf %109, %110 : vector<16x32xf32>
    %cst_41 = arith.constant 0.000000e+00 : f32
    %112 = vector.broadcast %cst_41 : f32 to vector<16x32xf32>
    %113 = arith.cmpf oge, %111, %112 : vector<16x32xf32>
    %cst_42 = arith.constant 2.000000e-01 : f32
    %114 = vector.broadcast %cst_42 : f32 to vector<16x32xf32>
    %115 = arith.mulf %114, %111 : vector<16x32xf32>
    %116 = arith.select %113, %111, %115 : vector<16x32xi1>, vector<16x32xf32>
    %cst_43 = arith.constant 0.000000e+00 : f32
    %117 = vector.broadcast %cst_43 : f32 to vector<16x32xf32>
    %118 = arith.cmpf ogt, %2, %117 : vector<16x32xf32>
    %cst_44 = arith.constant -1.000000e+30 : f32
    %119 = vector.broadcast %cst_44 : f32 to vector<16x32xf32>
    %120 = arith.select %118, %116, %119 : vector<16x32xi1>, vector<16x32xf32>
    %cst_45 = arith.constant dense<0xFF800000> : vector<16xf32>
    %121 = vector.multi_reduction <maximumf>, %120, %cst_45 [1] : vector<16x32xf32> to vector<16xf32>
    %122 = vector.shape_cast %121 : vector<16xf32> to vector<16x1xf32>
    %123 = vector.broadcast %122 : vector<16x1xf32> to vector<16x32xf32>
    %124 = arith.subf %120, %123 : vector<16x32xf32>
    %125 = math.exp %124 : vector<16x32xf32>
    %126 = arith.mulf %125, %2 : vector<16x32xf32>
    %cst_46 = arith.constant dense<0.000000e+00> : vector<16xf32>
    %127 = vector.multi_reduction <add>, %126, %cst_46 [1] : vector<16x32xf32> to vector<16xf32>
    %128 = vector.shape_cast %127 : vector<16xf32> to vector<16x1xf32>
    %cst_47 = arith.constant 0.000000e+00 : f32
    %129 = vector.broadcast %cst_47 : f32 to vector<16x1xf32>
    %130 = arith.cmpf ogt, %128, %129 : vector<16x1xf32>
    %cst_48 = arith.constant 1.000000e+00 : f32
    %131 = vector.broadcast %cst_48 : f32 to vector<16x1xf32>
    %132 = arith.select %130, %128, %131 : vector<16x1xi1>, vector<16x1xf32>
    %133 = tpu.reciprocal %132 {approx = true} : vector<16x1xf32> -> vector<16x1xf32>
    %134 = vector.broadcast %133 : vector<16x1xf32> to vector<16x32xf32>
    %135 = arith.mulf %126, %134 : vector<16x32xf32>
    %cst_49 = arith.constant dense<0.000000e+00> : vector<16x16xf32>
    %136 = tpu.matmul %135, %97, %cst_49 {dimension_numbers = #tpu.dot_dimension_numbers<[1], [0], [0], [1], [0, 0, 1, 1], [], []>} : vector<16x32xf32>, vector<32x16xf32>, vector<16x16xf32> -> vector<16x16xf32>
    %137 = vector.extract_strided_slice %6 {offsets = [0, 32], sizes = [1, 16], strides = [1, 1]} : vector<1x64xf32> to vector<1x16xf32>
    %138 = vector.broadcast %137 : vector<1x16xf32> to vector<16x16xf32>
    %139 = arith.addf %136, %138 : vector<16x16xf32>
    %c0_50 = arith.constant 0 : index
    %c32 = arith.constant 32 : index
    %140 = vector.load %arg9[%c0_50, %c32] : memref<16x64xf32, #tpu.memory_space<vmem>>, vector<16x16xf32>
    tpu.vector_store %arg9[%c0_50, %c32], %139 {strides = array<i32>} : memref<16x64xf32, #tpu.memory_space<vmem>>, vector<16x16xf32>,
    %141 = vector.extract_strided_slice %7 {offsets = [0, 48], sizes = [32, 16], strides = [1, 1]} : vector<32x64xf32> to vector<32x16xf32>
    %142 = vector.extract_strided_slice %8 {offsets = [0, 48], sizes = [16, 16], strides = [1, 1]} : vector<16x64xf32> to vector<16x16xf32>
    %143 = vector.extract_strided_slice %5 {offsets = [0, 48], sizes = [1, 16], strides = [1, 1]} : vector<1x64xf32> to vector<1x16xf32>
    %144 = vector.broadcast %143 : vector<1x16xf32> to vector<16x16xf32>
    %145 = arith.mulf %142, %144 : vector<16x16xf32>
    %cst_51 = arith.constant dense<0.000000e+00> : vector<16xf32>
    %146 = vector.multi_reduction <add>, %145, %cst_51 [1] : vector<16x16xf32> to vector<16xf32>
    %147 = vector.shape_cast %146 : vector<16xf32> to vector<16x1xf32>
    %148 = vector.extract_strided_slice %4 {offsets = [0, 48], sizes = [1, 16], strides = [1, 1]} : vector<1x64xf32> to vector<1x16xf32>
    %149 = vector.shape_cast %148 : vector<1x16xf32> to vector<1x16xf32>
    %150 = vector.broadcast %149 : vector<1x16xf32> to vector<8x16xf32>
    %cst_52 = arith.constant dense<0.000000e+00> : vector<8x32xf32>
    %151 = tpu.matmul %150, %141, %cst_52 {dimension_numbers = #tpu.dot_dimension_numbers<[1], [1], [0], [0], [0, 0, 1, 0], [], []>} : vector<8x16xf32>, vector<32x16xf32>, vector<8x32xf32> -> vector<8x32xf32>
    %152 = vector.extract_strided_slice %151 {offsets = [0, 0], sizes = [1, 32], strides = [1, 1]} : vector<8x32xf32> to vector<1x32xf32>
    %153 = vector.broadcast %147 : vector<16x1xf32> to vector<16x32xf32>
    %154 = vector.broadcast %152 : vector<1x32xf32> to vector<16x32xf32>
    %155 = arith.addf %153, %154 : vector<16x32xf32>
    %cst_53 = arith.constant 0.000000e+00 : f32
    %156 = vector.broadcast %cst_53 : f32 to vector<16x32xf32>
    %157 = arith.cmpf oge, %155, %156 : vector<16x32xf32>
    %cst_54 = arith.constant 2.000000e-01 : f32
    %158 = vector.broadcast %cst_54 : f32 to vector<16x32xf32>
    %159 = arith.mulf %158, %155 : vector<16x32xf32>
    %160 = arith.select %157, %155, %159 : vector<16x32xi1>, vector<16x32xf32>
    %cst_55 = arith.constant 0.000000e+00 : f32
    %161 = vector.broadcast %cst_55 : f32 to vector<16x32xf32>
    %162 = arith.cmpf ogt, %2, %161 : vector<16x32xf32>
    %cst_56 = arith.constant -1.000000e+30 : f32
    %163 = vector.broadcast %cst_56 : f32 to vector<16x32xf32>
    %164 = arith.select %162, %160, %163 : vector<16x32xi1>, vector<16x32xf32>
    %cst_57 = arith.constant dense<0xFF800000> : vector<16xf32>
    %165 = vector.multi_reduction <maximumf>, %164, %cst_57 [1] : vector<16x32xf32> to vector<16xf32>
    %166 = vector.shape_cast %165 : vector<16xf32> to vector<16x1xf32>
    %167 = vector.broadcast %166 : vector<16x1xf32> to vector<16x32xf32>
    %168 = arith.subf %164, %167 : vector<16x32xf32>
    %169 = math.exp %168 : vector<16x32xf32>
    %170 = arith.mulf %169, %2 : vector<16x32xf32>
    %cst_58 = arith.constant dense<0.000000e+00> : vector<16xf32>
    %171 = vector.multi_reduction <add>, %170, %cst_58 [1] : vector<16x32xf32> to vector<16xf32>
    %172 = vector.shape_cast %171 : vector<16xf32> to vector<16x1xf32>
    %cst_59 = arith.constant 0.000000e+00 : f32
    %173 = vector.broadcast %cst_59 : f32 to vector<16x1xf32>
    %174 = arith.cmpf ogt, %172, %173 : vector<16x1xf32>
    %cst_60 = arith.constant 1.000000e+00 : f32
    %175 = vector.broadcast %cst_60 : f32 to vector<16x1xf32>
    %176 = arith.select %174, %172, %175 : vector<16x1xi1>, vector<16x1xf32>
    %177 = tpu.reciprocal %176 {approx = true} : vector<16x1xf32> -> vector<16x1xf32>
    %178 = vector.broadcast %177 : vector<16x1xf32> to vector<16x32xf32>
    %179 = arith.mulf %170, %178 : vector<16x32xf32>
    %cst_61 = arith.constant dense<0.000000e+00> : vector<16x16xf32>
    %180 = tpu.matmul %179, %141, %cst_61 {dimension_numbers = #tpu.dot_dimension_numbers<[1], [0], [0], [1], [0, 0, 1, 1], [], []>} : vector<16x32xf32>, vector<32x16xf32>, vector<16x16xf32> -> vector<16x16xf32>
    %181 = vector.extract_strided_slice %6 {offsets = [0, 48], sizes = [1, 16], strides = [1, 1]} : vector<1x64xf32> to vector<1x16xf32>
    %182 = vector.broadcast %181 : vector<1x16xf32> to vector<16x16xf32>
    %183 = arith.addf %180, %182 : vector<16x16xf32>
    %c0_62 = arith.constant 0 : index
    %c48 = arith.constant 48 : index
    %184 = vector.load %arg9[%c0_62, %c48] : memref<16x64xf32, #tpu.memory_space<vmem>>, vector<16x16xf32>
    tpu.vector_store %arg9[%c0_62, %c48], %183 {strides = array<i32>} : memref<16x64xf32, #tpu.memory_space<vmem>>, vector<16x16xf32>,
    %c0_63 = arith.constant 0 : index
    %c0_64 = arith.constant 0 : index
    %185 = vector.load %arg9[%c0_63, %c0_64] : memref<16x64xf32, #tpu.memory_space<vmem>>, vector<16x64xf32>
    %cst_65 = arith.constant dense<0.000000e+00> : vector<64xf32>
    %186 = vector.multi_reduction <add>, %185, %cst_65 [0] : vector<16x64xf32> to vector<64xf32>
    %187 = vector.shape_cast %186 : vector<64xf32> to vector<1x64xf32>
    %cst_66 = arith.constant 1.600000e+01 : f32
    %188 = vector.broadcast %cst_66 : f32 to vector<1x64xf32>
    %189 = arith.divf %187, %188 : vector<1x64xf32>
    %190 = vector.broadcast %189 : vector<1x64xf32> to vector<16x64xf32>
    %191 = arith.subf %185, %190 : vector<16x64xf32>
    %192 = arith.mulf %191, %191 : vector<16x64xf32>
    %cst_67 = arith.constant dense<0.000000e+00> : vector<64xf32>
    %193 = vector.multi_reduction <add>, %192, %cst_67 [0] : vector<16x64xf32> to vector<64xf32>
    %194 = vector.shape_cast %193 : vector<64xf32> to vector<1x64xf32>
    %cst_68 = arith.constant 1.600000e+01 : f32
    %195 = vector.broadcast %cst_68 : f32 to vector<1x64xf32>
    %196 = arith.divf %194, %195 : vector<1x64xf32>
    %197 = vector.broadcast %189 : vector<1x64xf32> to vector<16x64xf32>
    %198 = arith.subf %185, %197 : vector<16x64xf32>
    %cst_69 = arith.constant 9.99999974E-6 : f32
    %199 = vector.broadcast %cst_69 : f32 to vector<1x64xf32>
    %200 = arith.addf %196, %199 : vector<1x64xf32>
    %201 = math.rsqrt %200 : vector<1x64xf32>
    %202 = vector.broadcast %201 : vector<1x64xf32> to vector<16x64xf32>
    %203 = arith.mulf %198, %202 : vector<16x64xf32>
    %c0_70 = arith.constant 0 : index
    %c0_71 = arith.constant 0 : index
    %204 = vector.load %arg7[%c0_70, %c0_71] : memref<1x64xf32, #tpu.memory_space<vmem>>, vector<1x64xf32>
    %205 = vector.broadcast %204 : vector<1x64xf32> to vector<16x64xf32>
    %206 = arith.mulf %203, %205 : vector<16x64xf32>
    %c0_72 = arith.constant 0 : index
    %c0_73 = arith.constant 0 : index
    %207 = vector.load %arg8[%c0_72, %c0_73] : memref<1x64xf32, #tpu.memory_space<vmem>>, vector<1x64xf32>
    %208 = vector.broadcast %207 : vector<1x64xf32> to vector<16x64xf32>
    %209 = arith.addf %206, %208 : vector<16x64xf32>
    %cst_74 = arith.constant 0.000000e+00 : f32
    %210 = vector.broadcast %cst_74 : f32 to vector<16x64xf32>
    %211 = arith.cmpf ogt, %209, %210 : vector<16x64xf32>
    %cst_75 = arith.constant 0.000000e+00 : f32
    %212 = vector.broadcast %cst_75 : f32 to vector<16x64xf32>
    %213 = arith.minimumf %209, %212 : vector<16x64xf32>
    %214 = math.exp %213 : vector<16x64xf32>
    %cst_76 = arith.constant 1.000000e+00 : f32
    %215 = vector.broadcast %cst_76 : f32 to vector<16x64xf32>
    %216 = arith.subf %214, %215 : vector<16x64xf32>
    %217 = arith.select %211, %209, %216 : vector<16x64xi1>, vector<16x64xf32>
    %c0_77 = arith.constant 0 : index
    %c0_78 = arith.constant 0 : index
    %218 = vector.load %arg9[%c0_77, %c0_78] : memref<16x64xf32, #tpu.memory_space<vmem>>, vector<16x64xf32>
    tpu.vector_store %arg9[%c0_77, %c0_78], %217 {strides = array<i32>} : memref<16x64xf32, #tpu.memory_space<vmem>>, vector<16x64xf32>,
    return
  }
}

</mosaic_0001>

<llo_original>
// kernel: tpu_custom_call.1
$region0: #{tpu_custom_call.1}
  #allocation0 [shape = 'u32[]', space=smem, size = 0x4, offset = 0x4, fixed_abs, tag = 'smem constant byte address 0x4 - core index']
  #allocation1 [shape = 'u32[144,128]{1,0:T(1,128)}', space=vmem, size = 0x12000, scoped, tag = 'internal scratch']
  %s0 = inlined_call_operand.hbm [shape: f32[32,32], index: 0, kind: input, shape index: {}]
  %s1 = inlined_call_operand.hbm [shape: f32[16,32], index: 1, kind: input, shape index: {}]
  %s2 = inlined_call_operand.hbm [shape: f32[16,32], index: 2, kind: input, shape index: {}]
  %s3 = inlined_call_operand.hbm [shape: f32[32,64], index: 3, kind: input, shape index: {}]
  %s4 = inlined_call_operand.vmem [shape: f32[1,64], index: 4, kind: input, shape index: {}]
  %s5 = inlined_call_operand.vmem [shape: f32[1,64], index: 5, kind: input, shape index: {}]
  %s6 = inlined_call_operand.vmem [shape: f32[1,64], index: 6, kind: input, shape index: {}]
  %s7 = inlined_call_operand.vmem [shape: f32[1,64], index: 7, kind: input, shape index: {}]
  %s8 = inlined_call_operand.vmem [shape: f32[1,64], index: 8, kind: input, shape index: {}]
  %s9 = inlined_call_operand.hbm [shape: f32[16,64], index: 9, kind: output, shape index: {}]
  %s10 = sld [smem:[#allocation0]]
  $region62: #{tpu_custom_call.1} parent=0
    _
  %s12 = ssub.s32 1, %s10
  %s13 = scalar_select 0, %s12, %s10
  $region1: #{tpu_custom_call.1} parent=0
    #allocation2 [shape = 'u8[16384]{0}', space=vmem, size = 0x4000, scoped, tag = 'input window, operand 0, single buffered']
    #allocation3 [shape = 's32[1]{0}', space=sflag, size = 0x4, scoped, tag = 'scoped memory for tpu_custom_call.1']
    #allocation4 [shape = 's32[1]{0}', space=sflag, size = 0x4, scoped, tag = 'scoped memory for tpu_custom_call.1']
    #allocation5 [shape = 'u8[8192]{0}', space=vmem, size = 0x2000, scoped, tag = 'input window, operand 1, single buffered']
    #allocation6 [shape = 's32[1]{0}', space=sflag, size = 0x4, scoped, tag = 'scoped memory for tpu_custom_call.1']
    #allocation7 [shape = 'u8[8192]{0}', space=vmem, size = 0x2000, scoped, tag = 'input window, operand 2, single buffered']
    #allocation8 [shape = 'u8[16384]{0}', space=vmem, size = 0x4000, scoped, tag = 'input window, operand 3, single buffered']
    #allocation9 [shape = 's32[1]{0}', space=sflag, size = 0x4, scoped, tag = 'scoped memory for tpu_custom_call.1']
    #allocation10 [shape = 'u8[8192]{0}', space=vmem, size = 0x2000, scoped, tag = 'output window, operand 0, single buffered']
    %14 = vsyncpa [#allocation3], 0
    %15 = vsyncpa [#allocation6], 0
    %16 = vsyncpa [#allocation9], 0
    %17 = vsyncpa [#allocation4], 0
    // Predicated region
    $region2: #{tpu_custom_call.1} parent=1 // pred_check
      _
    $region3: #{tpu_custom_call.1} parent=1 // pred_check_branch
      %19 = sbr.rel (0) target = $region5
    $region4: #{tpu_custom_call.1} parent=1 // pred_region
      %s21 = ssub.s32 512, 512
      %22 = vsyncadd [#allocation3], %s21
      %s23 = sshll.u32 [#allocation2], 4
      %s24 = int_to_ptr.vmem [resolvable:$true] %s23
      %29 = dma.hbm_to_vmem [thread:$0]  %s0, 512, %s24, [#allocation3], 128, 128, 8
    $region5: #{tpu_custom_call.1} parent=1 // pred_fallthru
      _
    // Predicated region
    $region6: #{tpu_custom_call.1} parent=1 // pred_check
      _
    $region7: #{tpu_custom_call.1} parent=1 // pred_check_branch
      %31 = sbr.rel (0) target = $region9
    $region8: #{tpu_custom_call.1} parent=1 // pred_region
      %s33 = ssub.s32 256, 256
      %34 = vsyncadd [#allocation6], %s33
      %s35 = sshll.u32 [#allocation5], 4
      %s36 = int_to_ptr.vmem [resolvable:$true] %s35
      %41 = dma.hbm_to_vmem [thread:$0]  %s1, 256, %s36, [#allocation6], 128, 128, 8
    $region9: #{tpu_custom_call.1} parent=1 // pred_fallthru
      _
    // Predicated region
    $region10: #{tpu_custom_call.1} parent=1 // pred_check
      _
    $region11: #{tpu_custom_call.1} parent=1 // pred_check_branch
      %43 = sbr.rel (0) target = $region13
    $region12: #{tpu_custom_call.1} parent=1 // pred_region
      %s45 = ssub.s32 256, 256
      %46 = vsyncadd [#allocation6], %s45
      %s47 = sshll.u32 [#allocation7], 4
      %s48 = int_to_ptr.vmem [resolvable:$true] %s47
      %53 = dma.hbm_to_vmem [thread:$0]  %s2, 256, %s48, [#allocation6], 128, 128, 8
    $region13: #{tpu_custom_call.1} parent=1 // pred_fallthru
      _
    // Predicated region
    $region14: #{tpu_custom_call.1} parent=1 // pred_check
      _
    $region15: #{tpu_custom_call.1} parent=1 // pred_check_branch
      %55 = sbr.rel (0) target = $region17
    $region16: #{tpu_custom_call.1} parent=1 // pred_region
      %s57 = ssub.s32 512, 512
      %58 = vsyncadd [#allocation9], %s57
      %s59 = sshll.u32 [#allocation8], 4
      %s60 = int_to_ptr.vmem [resolvable:$true] %s59
      %65 = dma.hbm_to_vmem [thread:$0]  %s3, 512, %s60, [#allocation9], 128, 128, 8
    $region17: #{tpu_custom_call.1} parent=1 // pred_fallthru
      _
    // Predicated region
    $region18: #{tpu_custom_call.1} parent=1 // pred_check
      _
    $region19: #{tpu_custom_call.1} parent=1 // pred_check_branch
      %67 = sbr.rel (0) target = $region21
    $region20: #{tpu_custom_call.1} parent=1 // pred_region
      _
    $region21: #{tpu_custom_call.1} parent=1 // pred_fallthru
      _
    // Predicated region
    $region22: #{tpu_custom_call.1} parent=1 // pred_check
      _
    $region23: #{tpu_custom_call.1} parent=1 // pred_check_branch
      %69 = sbr.rel (0) target = $region25
    $region24: #{tpu_custom_call.1} parent=1 // pred_region
      _
    $region25: #{tpu_custom_call.1} parent=1 // pred_fallthru
      _
    // Predicated region
    $region26: #{tpu_custom_call.1} parent=1 // pred_check
      _
    $region27: #{tpu_custom_call.1} parent=1 // pred_check_branch
      %71 = sbr.rel (0) target = $region29
    $region28: #{tpu_custom_call.1} parent=1 // pred_region
      _
    $region29: #{tpu_custom_call.1} parent=1 // pred_fallthru
      _
    // Predicated region
    $region30: #{tpu_custom_call.1} parent=1 // pred_check
      _
    $region31: #{tpu_custom_call.1} parent=1 // pred_check_branch
      %73 = sbr.rel (0) target = $region33
    $region32: #{tpu_custom_call.1} parent=1 // pred_region
      _
    $region33: #{tpu_custom_call.1} parent=1 // pred_fallthru
      _
    // Predicated region
    $region34: #{tpu_custom_call.1} parent=1 // pred_check
      _
    $region35: #{tpu_custom_call.1} parent=1 // pred_check_branch
      %75 = sbr.rel (0) target = $region37
    $region36: #{tpu_custom_call.1} parent=1 // pred_region
      _
    $region37: #{tpu_custom_call.1} parent=1 // pred_fallthru
      _
    // Predicated region
    $region38: #{tpu_custom_call.1} parent=1 // pred_check
      _
    $region39: #{tpu_custom_call.1} parent=1 // pred_check_branch
      %77 = sbr.rel (0) target = $region41
    $region40: #{tpu_custom_call.1} parent=1 // pred_region
      %78 = dma.done [#allocation3], 512
    $region41: #{tpu_custom_call.1} parent=1 // pred_fallthru
      _
    // Predicated region
    $region42: #{tpu_custom_call.1} parent=1 // pred_check
      _
    $region43: #{tpu_custom_call.1} parent=1 // pred_check_branch
      %80 = sbr.rel (0) target = $region45
    $region44: #{tpu_custom_call.1} parent=1 // pred_region
      %81 = dma.done [#allocation6], 256
    $region45: #{tpu_custom_call.1} parent=1 // pred_fallthru
      _
    // Predicated region
    $region46: #{tpu_custom_call.1} parent=1 // pred_check
      _
    $region47: #{tpu_custom_call.1} parent=1 // pred_check_branch
      %83 = sbr.rel (0) target = $region49
    $region48: #{tpu_custom_call.1} parent=1 // pred_region
      %84 = dma.done [#allocation6], 256
    $region49: #{tpu_custom_call.1} parent=1 // pred_fallthru
      _
    // Predicated region
    $region50: #{tpu_custom_call.1} parent=1 // pred_check
      _
    $region51: #{tpu_custom_call.1} parent=1 // pred_check_branch
      %86 = sbr.rel (0) target = $region53
    $region52: #{tpu_custom_call.1} parent=1 // pred_region
      %87 = dma.done [#allocation9], 512
    $region53: #{tpu_custom_call.1} parent=1 // pred_fallthru
      _
    %v88 = vld [vmem:[#allocation2] sm:$0xff]
    %v89 = vld [vmem:[#allocation2 + $0x8] sm:$0xff]
    %v90 = vld [vmem:[#allocation2 + $0x10] sm:$0xff]
    %v91 = vld [vmem:[#allocation2 + $0x18] sm:$0xff]
    %v92 = vld [vmem:[#allocation5] sm:$0xff]
    %v93 = vld [vmem:[#allocation5 + $0x8] sm:$0xff]
    %v94 = vld [vmem:[#allocation7] sm:$0xff]
    %v95 = vld [vmem:[#allocation7 + $0x8] sm:$0xff]
    %v96 = vld [vmem:[#allocation8] sm:$0xff]
    %v97 = vld [vmem:[#allocation8 + $0x8] sm:$0xff]
    %v98 = vld [vmem:[#allocation8 + $0x10] sm:$0xff]
    %v99 = vld [vmem:[#allocation8 + $0x18] sm:$0xff]
    %v100 = vld [vmem:[%s4] sm:$0x1]
    %v101 = vld [vmem:[%s5] sm:$0x1]
    %v102 = vld [vmem:[%s6] sm:$0x1]
    %vm103 = vcmask 261120
    %v105 = vsel %vm103, %v88, 0
    %v108 = vsel %vm103, %v89, 0
    %v111 = vsel %vm103, %v90, 0
    %v114 = vsel %vm103, %v91, 0
    %116 = vmatprep.subr.mxu0 0.0
    %117 = vmatpush1.msra.mxu0 %v96
    %118 = vmatprep.subr.mxu0 0.0
    %119 = vmatpush1.msra.mxu0 %v97
    %120 = vmatprep.subr.mxu0 0.0
    %121 = vmatpush1.msra.mxu0 %v98
    %122 = vmatprep.subr.mxu0 0.0
    %123 = vmatpush1.msra.mxu0 %v99
    %124 = vmatprep.subr.mxu0 0.0
    %125 = vmatpush1.msra.mxu0 0.0
    %126 = vmatprep.subr.mxu0 0.0
    %127 = vmatpush1.msra.mxu0 0.0
    %128 = vmatprep.subr.mxu0 0.0
    %129 = vmatpush1.msra.mxu0 0.0
    %130 = vmatprep.subr.mxu0 0.0
    %131 = vmatpush1.msra.mxu0 0.0
    %132 = vmatprep.subr.mxu0 0.0
    %133 = vmatpush1.msra.mxu0 0.0
    %134 = vmatprep.subr.mxu0 0.0
    %135 = vmatpush1.msra.mxu0 0.0
    %136 = vmatprep.subr.mxu0 0.0
    %137 = vmatpush1.msra.mxu0 0.0
    %138 = vmatprep.subr.mxu0 0.0
    %139 = vmatpush1.msra.mxu0 0.0
    %140 = vmatprep.subr.mxu0 0.0
    %141 = vmatpush1.msra.mxu0 0.0
    %142 = vmatprep.subr.mxu0 0.0
    %143 = vmatpush1.msra.mxu0 0.0
    %144 = vmatprep.subr.mxu0 0.0
    %145 = vmatpush1.msra.mxu0 0.0
    %146 = vmatprep.subr.mxu0 0.0
    %147 = vmatpush1.msra.mxu0 0.0
    %148 = vmatprep.subr.mxu0 0.0
    %149 = vmatpush1.msra.mxu0 0.0
    %150 = vmatprep.subr.mxu0 0.0
    %151 = vmatpush1.msra.mxu0 0.0
    %152 = vmatprep.subr.mxu0 0.0
    %153 = vmatpush1.msra.mxu0 0.0
    %154 = vmatprep.subr.mxu0 0.0
    %155 = vmatpush1.msra.mxu0 0.0
    %156 = vmatprep.subr.mxu0 0.0
    %157 = vmatpush1.msra.mxu0 0.0
    %158 = vmatprep.subr.mxu0 0.0
    %159 = vmatpush1.msra.mxu0 0.0
    %160 = vmatprep.subr.mxu0 0.0
    %161 = vmatpush1.msra.mxu0 0.0
    %162 = vmatprep.subr.mxu0 0.0
    %163 = vmatpush1.msra.mxu0 0.0
    %164 = vmatprep.subr.mxu0 0.0
    %165 = vmatpush1.msra.mxu0 0.0
    %166 = vmatprep.subr.mxu0 0.0
    %167 = vmatpush1.msra.mxu0 0.0
    %168 = vmatprep.subr.mxu0 0.0
    %169 = vmatpush1.msra.mxu0 0.0
    %170 = vmatprep.subr.mxu0 0.0
    %171 = vmatpush1.msra.mxu0 0.0
    %172 = vmatprep.subr.mxu0 0.0
    %173 = vmatpush1.msra.mxu0 0.0
    %174 = vmatprep.subr.mxu0 0.0
    %175 = vmatpush1.msra.mxu0 0.0
    %176 = vmatprep.subr.mxu0 0.0
    %177 = vmatpush1.msra.mxu0 0.0
    %178 = vmatprep.subr.mxu0 0.0
    %179 = vmatpush1.msra.mxu0 0.0
    %180 = vmatprep.mubr.f32.mxu0 0.0
    %181 = vmatmul.mubr.f32.gmra.mrb[0].mxu0 %v105
    %v182 = vpop.f32.mrb[0].mxu0
    %v183 = vadd.f32 0.0, %v182
    %v184 = vpop.f32.mrb[0].mxu0
    %185 = vmatprep.mubr.f32.mxu0 0.0
    %186 = vmatmul.mubr.f32.gmra.mrb[0].mxu0 %v108
    %v187 = vpop.f32.mrb[0].mxu0
    %v188 = vadd.f32 0.0, %v187
    %v189 = vpop.f32.mrb[0].mxu0
    %190 = vmatprep.mubr.f32.mxu0 0.0
    %191 = vmatmul.mubr.f32.gmra.mrb[0].mxu0 %v111
    %v192 = vpop.f32.mrb[0].mxu0
    %v193 = vadd.f32 0.0, %v192
    %v194 = vpop.f32.mrb[0].mxu0
    %195 = vmatprep.mubr.f32.mxu0 0.0
    %196 = vmatmul.mubr.f32.gmra.mrb[0].mxu0 %v114
    %v197 = vpop.f32.mrb[0].mxu0
    %v198 = vadd.f32 0.0, %v197
    %v199 = vpop.f32.mrb[0].mxu0
    %200 = vdwg.mxu0
    %v202 = vsel %vm103, %v92, 0
    %v205 = vsel %vm103, %v93, 0
    %207 = vmatprep.subr.mxu0 0.0
    %208 = vmatpush1.msra.mxu0 %v96
    %209 = vmatprep.subr.mxu0 0.0
    %210 = vmatpush1.msra.mxu0 %v97
    %211 = vmatprep.subr.mxu0 0.0
    %212 = vmatpush1.msra.mxu0 %v98
    %213 = vmatprep.subr.mxu0 0.0
    %214 = vmatpush1.msra.mxu0 %v99
    %215 = vmatprep.subr.mxu0 0.0
    %216 = vmatpush1.msra.mxu0 0.0
    %217 = vmatprep.subr.mxu0 0.0
    %218 = vmatpush1.msra.mxu0 0.0
    %219 = vmatprep.subr.mxu0 0.0
    %220 = vmatpush1.msra.mxu0 0.0
    %221 = vmatprep.subr.mxu0 0.0
    %222 = vmatpush1.msra.mxu0 0.0
    %223 = vmatprep.subr.mxu0 0.0
    %224 = vmatpush1.msra.mxu0 0.0
    %225 = vmatprep.subr.mxu0 0.0
    %226 = vmatpush1.msra.mxu0 0.0
    %227 = vmatprep.subr.mxu0 0.0
    %228 = vmatpush1.msra.mxu0 0.0
    %229 = vmatprep.subr.mxu0 0.0
    %230 = vmatpush1.msra.mxu0 0.0
    %231 = vmatprep.subr.mxu0 0.0
    %232 = vmatpush1.msra.mxu0 0.0
    %233 = vmatprep.subr.mxu0 0.0
    %234 = vmatpush1.msra.mxu0 0.0
    %235 = vmatprep.subr.mxu0 0.0
    %236 = vmatpush1.msra.mxu0 0.0
    %237 = vmatprep.subr.mxu0 0.0
    %238 = vmatpush1.msra.mxu0 0.0
    %239 = vmatprep.subr.mxu0 0.0
    %240 = vmatpush1.msra.mxu0 0.0
    %241 = vmatprep.subr.mxu0 0.0
    %242 = vmatpush1.msra.mxu0 0.0
    %243 = vmatprep.subr.mxu0 0.0
    %244 = vmatpush1.msra.mxu0 0.0
    %245 = vmatprep.subr.mxu0 0.0
    %246 = vmatpush1.msra.mxu0 0.0
    %247 = vmatprep.subr.mxu0 0.0
    %248 = vmatpush1.msra.mxu0 0.0
    %249 = vmatprep.subr.mxu0 0.0
    %250 = vmatpush1.msra.mxu0 0.0
    %251 = vmatprep.subr.mxu0 0.0
    %252 = vmatpush1.msra.mxu0 0.0
    %253 = vmatprep.subr.mxu0 0.0
    %254 = vmatpush1.msra.mxu0 0.0
    %255 = vmatprep.subr.mxu0 0.0
    %256 = vmatpush1.msra.mxu0 0.0
    %257 = vmatprep.subr.mxu0 0.0
    %258 = vmatpush1.msra.mxu0 0.0
    %259 = vmatprep.subr.mxu0 0.0
    %260 = vmatpush1.msra.mxu0 0.0
    %261 = vmatprep.subr.mxu0 0.0
    %262 = vmatpush1.msra.mxu0 0.0
    %263 = vmatprep.subr.mxu0 0.0
    %264 = vmatpush1.msra.mxu0 0.0
    %265 = vmatprep.subr.mxu0 0.0
    %266 = vmatpush1.msra.mxu0 0.0
    %267 = vmatprep.subr.mxu0 0.0
    %268 = vmatpush1.msra.mxu0 0.0
    %269 = vmatprep.subr.mxu0 0.0
    %270 = vmatpush1.msra.mxu0 0.0
    %271 = vmatprep.mubr.f32.mxu0 0.0
    %272 = vmatmul.mubr.f32.gmra.mrb[0].mxu0 %v202
    %v273 = vpop.f32.mrb[0].mxu0
    %v274 = vadd.f32 0.0, %v273
    %v275 = vpop.f32.mrb[0].mxu0
    %276 = vmatprep.mubr.f32.mxu0 0.0
    %277 = vmatmul.mubr.f32.gmra.mrb[0].mxu0 %v205
    %v278 = vpop.f32.mrb[0].mxu0
    %v279 = vadd.f32 0.0, %v278
    %v280 = vpop.f32.mrb[0].mxu0
    %281 = vdwg.mxu0
    %v283 = vlaneseq
    %v284 = vshrl.u32 %v283, 7
    %v285 = vsub.s32 0, %v284
    %v286 = vrot.slane %v101, %v285
    %v288 = vmul.f32 %v274, %v286
    %v289 = vmul.f32 %v279, %v286
    %vm290 = vcmask 130048
    %v291 = vsel %vm290, %v288, 0.0
    %292 = vadd.xlane.f32.xlu0 %v291
    %v293 = vpop.xlane.xlu0 %292
    %v294 = vsel %vm290, %v289, 0.0
    %295 = vadd.xlane.f32.xlu0 %v294
    %v296 = vpop.xlane.xlu0 %295
    %v298 = vlaneseq
    %v299 = vshrl.u32 %v298, 7
    %v300 = vsub.s32 0, %v299
    %v301 = vrot.slane %v100, %v300
    %v302 = vsel %vm290, %v301, 0
    %v305 = vsel %vm290, %v183, 0
    %v308 = vsel %vm290, %v188, 0
    %v311 = vsel %vm290, %v193, 0
    %v314 = vsel %vm290, %v198, 0
    %316 = vmatprep.subr.mxu0 0.0
    %317 = vmatpush1.xpose.msra.mxu0 %v305
    %318 = vmatprep.subr.mxu0 0.0
    %319 = vmatpush1.xpose.msra.mxu0 %v308
    %320 = vmatprep.subr.mxu0 0.0
    %321 = vmatpush1.xpose.msra.mxu0 %v311
    %322 = vmatprep.subr.mxu0 0.0
    %323 = vmatpush1.xpose.msra.mxu0 %v314
    %324 = vmatprep.subr.mxu0 0.0
    %325 = vmatpush1.xpose.msra.mxu0 0.0
    %326 = vmatprep.subr.mxu0 0.0
    %327 = vmatpush1.xpose.msra.mxu0 0.0
    %328 = vmatprep.subr.mxu0 0.0
    %329 = vmatpush1.xpose.msra.mxu0 0.0
    %330 = vmatprep.subr.mxu0 0.0
    %331 = vmatpush1.xpose.msra.mxu0 0.0
    %332 = vmatprep.subr.mxu0 0.0
    %333 = vmatpush1.xpose.msra.mxu0 0.0
    %334 = vmatprep.subr.mxu0 0.0
    %335 = vmatpush1.xpose.msra.mxu0 0.0
    %336 = vmatprep.subr.mxu0 0.0
    %337 = vmatpush1.xpose.msra.mxu0 0.0
    %338 = vmatprep.subr.mxu0 0.0
    %339 = vmatpush1.xpose.msra.mxu0 0.0
    %340 = vmatprep.subr.mxu0 0.0
    %341 = vmatpush1.xpose.msra.mxu0 0.0
    %342 = vmatprep.subr.mxu0 0.0
    %343 = vmatpush1.xpose.msra.mxu0 0.0
    %344 = vmatprep.subr.mxu0 0.0
    %345 = vmatpush1.xpose.msra.mxu0 0.0
    %346 = vmatprep.subr.mxu0 0.0
    %347 = vmatpush1.xpose.msra.mxu0 0.0
    %348 = vmatprep.subr.mxu0 0.0
    %349 = vmatpush1.xpose.msra.mxu0 0.0
    %350 = vmatprep.subr.mxu0 0.0
    %351 = vmatpush1.xpose.msra.mxu0 0.0
    %352 = vmatprep.subr.mxu0 0.0
    %353 = vmatpush1.xpose.msra.mxu0 0.0
    %354 = vmatprep.subr.mxu0 0.0
    %355 = vmatpush1.xpose.msra.mxu0 0.0
    %356 = vmatprep.subr.mxu0 0.0
    %357 = vmatpush1.xpose.msra.mxu0 0.0
    %358 = vmatprep.subr.mxu0 0.0
    %359 = vmatpush1.xpose.msra.mxu0 0.0
    %360 = vmatprep.subr.mxu0 0.0
    %361 = vmatpush1.xpose.msra.mxu0 0.0
    %362 = vmatprep.subr.mxu0 0.0
    %363 = vmatpush1.xpose.msra.mxu0 0.0
    %364 = vmatprep.subr.mxu0 0.0
    %365 = vmatpush1.xpose.msra.mxu0 0.0
    %366 = vmatprep.subr.mxu0 0.0
    %367 = vmatpush1.xpose.msra.mxu0 0.0
    %368 = vmatprep.subr.mxu0 0.0
    %369 = vmatpush1.xpose.msra.mxu0 0.0
    %370 = vmatprep.subr.mxu0 0.0
    %371 = vmatpush1.xpose.msra.mxu0 0.0
    %372 = vmatprep.subr.mxu0 0.0
    %373 = vmatpush1.xpose.msra.mxu0 0.0
    %374 = vmatprep.subr.mxu0 0.0
    %375 = vmatpush1.xpose.msra.mxu0 0.0
    %376 = vmatprep.subr.mxu0 0.0
    %377 = vmatpush1.xpose.msra.mxu0 0.0
    %378 = vmatprep.subr.mxu0 0.0
    %379 = vmatpush1.xpose.msra.mxu0 0.0
    %380 = vmatprep.mubr.f32.mxu0 0.0
    %381 = vmatmul.mubr.f32.gmra.mrb[0].mxu0 %v302
    %v382 = vpop.f32.mrb[0].mxu0
    %v383 = vadd.f32 0.0, %v382
    %v384 = vpop.f32.mrb[0].mxu0
    %385 = vdwg.mxu0
    %v386 = vlaneseq
    %v387 = vshrl.u32 %v386, 7
    %v388 = vsub.s32 0, %v387
    %v389 = vrot.slane %v383, %v388
    %v390 = vadd.f32 %v293, %v389
    %v391 = vadd.f32 %v296, %v389
    %vm392 = vcmp.ge.f32.partialorder %v390, 0.0
    %vm393 = vcmp.ge.f32.partialorder %v391, 0.0
    %v394 = vmul.f32 %v390, 0.2
    %v395 = vmul.f32 %v391, 0.2
    %v396 = vsel %vm392, %v390, %v394
    %v397 = vsel %vm393, %v391, %v395
    %vm398 = vcmp.gt.f32.partialorder %v94, 0.0
    %vm399 = vcmp.gt.f32.partialorder %v95, 0.0
    %v400 = vsel %vm398, %v396, -1e+30
    %v401 = vsel %vm399, %v397, -1e+30
    %v402 = vsel %vm103, %v400, -inf
    %403 = vmax.xlane.f32.xlu0 %v402
    %v404 = vpop.xlane.xlu0 %403
    %v405 = vsel %vm103, %v401, -inf
    %406 = vmax.xlane.f32.xlu0 %v405
    %v407 = vpop.xlane.xlu0 %406
    %v408 = vsub.f32 %v400, %v404
    %v409 = vsub.f32 %v401, %v407
    %v410 = vmul.f32 %v408, 1.442695
    %v411 = vpow.pop %v410
    %v412 = vmul.f32 %v409, 1.442695
    %v413 = vpow.pop %v412
    %v414 = vmul.f32 %v411, %v94
    %v415 = vmul.f32 %v413, %v95
    %v416 = vsel %vm103, %v414, 0.0
    %417 = vadd.xlane.f32.xlu0 %v416
    %v418 = vpop.xlane.xlu0 %417
    %v419 = vsel %vm103, %v415, 0.0
    %420 = vadd.xlane.f32.xlu0 %v419
    %v421 = vpop.xlane.xlu0 %420
    %vm422 = vcmp.gt.f32.partialorder %v418, 0.0
    %vm423 = vcmp.gt.f32.partialorder %v421, 0.0
    %v424 = vsel %vm422, %v418, 1.0
    %v425 = vsel %vm423, %v421, 1.0
    %v426 = vrcp.pop %v424
    %v427 = vrcp.pop %v425
    %v428 = vmul.f32 %v414, %v426
    %v429 = vmul.f32 %v415, %v427
    %v431 = vlaneseq
    %v432 = vshrl.u32 %v431, 7
    %v433 = vsub.s32 0, %v432
    %v434 = vrot.slane %v102, %v433
    %v437 = vsel %vm103, %v428, 0
    %v440 = vsel %vm103, %v429, 0
    %442 = vmatprep.subr.mxu0 0.0
    %443 = vmatpush1.msra.mxu0 %v183
    %444 = vmatprep.subr.mxu0 0.0
    %445 = vmatpush1.msra.mxu0 %v188
    %446 = vmatprep.subr.mxu0 0.0
    %447 = vmatpush1.msra.mxu0 %v193
    %448 = vmatprep.subr.mxu0 0.0
    %449 = vmatpush1.msra.mxu0 %v198
    %450 = vmatprep.subr.mxu0 0.0
    %451 = vmatpush1.msra.mxu0 0.0
    %452 = vmatprep.subr.mxu0 0.0
    %453 = vmatpush1.msra.mxu0 0.0
    %454 = vmatprep.subr.mxu0 0.0
    %455 = vmatpush1.msra.mxu0 0.0
    %456 = vmatprep.subr.mxu0 0.0
    %457 = vmatpush1.msra.mxu0 0.0
    %458 = vmatprep.subr.mxu0 0.0
    %459 = vmatpush1.msra.mxu0 0.0
    %460 = vmatprep.subr.mxu0 0.0
    %461 = vmatpush1.msra.mxu0 0.0
    %462 = vmatprep.subr.mxu0 0.0
    %463 = vmatpush1.msra.mxu0 0.0
    %464 = vmatprep.subr.mxu0 0.0
    %465 = vmatpush1.msra.mxu0 0.0
    %466 = vmatprep.subr.mxu0 0.0
    %467 = vmatpush1.msra.mxu0 0.0
    %468 = vmatprep.subr.mxu0 0.0
    %469 = vmatpush1.msra.mxu0 0.0
    %470 = vmatprep.subr.mxu0 0.0
    %471 = vmatpush1.msra.mxu0 0.0
    %472 = vmatprep.subr.mxu0 0.0
    %473 = vmatpush1.msra.mxu0 0.0
    %474 = vmatprep.subr.mxu0 0.0
    %475 = vmatpush1.msra.mxu0 0.0
    %476 = vmatprep.subr.mxu0 0.0
    %477 = vmatpush1.msra.mxu0 0.0
    %478 = vmatprep.subr.mxu0 0.0
    %479 = vmatpush1.msra.mxu0 0.0
    %480 = vmatprep.subr.mxu0 0.0
    %481 = vmatpush1.msra.mxu0 0.0
    %482 = vmatprep.subr.mxu0 0.0
    %483 = vmatpush1.msra.mxu0 0.0
    %484 = vmatprep.subr.mxu0 0.0
    %485 = vmatpush1.msra.mxu0 0.0
    %486 = vmatprep.subr.mxu0 0.0
    %487 = vmatpush1.msra.mxu0 0.0
    %488 = vmatprep.subr.mxu0 0.0
    %489 = vmatpush1.msra.mxu0 0.0
    %490 = vmatprep.subr.mxu0 0.0
    %491 = vmatpush1.msra.mxu0 0.0
    %492 = vmatprep.subr.mxu0 0.0
    %493 = vmatpush1.msra.mxu0 0.0
    %494 = vmatprep.subr.mxu0 0.0
    %495 = vmatpush1.msra.mxu0 0.0
    %496 = vmatprep.subr.mxu0 0.0
    %497 = vmatpush1.msra.mxu0 0.0
    %498 = vmatprep.subr.mxu0 0.0
    %499 = vmatpush1.msra.mxu0 0.0
    %500 = vmatprep.subr.mxu0 0.0
    %501 = vmatpush1.msra.mxu0 0.0
    %502 = vmatprep.subr.mxu0 0.0
    %503 = vmatpush1.msra.mxu0 0.0
    %504 = vmatprep.subr.mxu0 0.0
    %505 = vmatpush1.msra.mxu0 0.0
    %506 = vmatprep.mubr.f32.mxu0 0.0
    %507 = vmatmul.mubr.f32.gmra.mrb[0].mxu0 %v437
    %v508 = vpop.f32.mrb[0].mxu0
    %v509 = vadd.f32 %v434, %v508
    %v510 = vpop.f32.mrb[0].mxu0
    %511 = vmatprep.mubr.f32.mxu0 0.0
    %512 = vmatmul.mubr.f32.gmra.mrb[0].mxu0 %v440
    %v513 = vpop.f32.mrb[0].mxu0
    %v514 = vadd.f32 %v434, %v513
    %v515 = vpop.f32.mrb[0].mxu0
    %516 = vdwg.mxu0
    %517 = vst.msk [vmem:[#allocation10] sm:$0xff] %vm290, %v509
    %518 = vst.msk [vmem:[#allocation10 + $0x8] sm:$0xff] %vm290, %v514
    %521 = vrot.lane.b32.xlu0 %v288, 112
    %v522 = vpop.permute.xlu0 %521
    %523 = vrot.lane.b32.xlu0 %v289, 112
    %v524 = vpop.permute.xlu0 %523
    %v527 = vsel %vm290, %v522, 0.0
    %528 = vadd.xlane.f32.xlu0 %v527
    %v529 = vpop.xlane.xlu0 %528
    %v530 = vsel %vm290, %v524, 0.0
    %531 = vadd.xlane.f32.xlu0 %v530
    %v532 = vpop.xlane.xlu0 %531
    %533 = vrot.lane.b32.xlu0 %v301, 112
    %v534 = vpop.permute.xlu0 %533
    %535 = vrot.lane.b32.xlu0 %v183, 112
    %v536 = vpop.permute.xlu0 %535
    %537 = vrot.lane.b32.xlu0 %v188, 112
    %v538 = vpop.permute.xlu0 %537
    %539 = vrot.lane.b32.xlu0 %v193, 112
    %v540 = vpop.permute.xlu0 %539
    %541 = vrot.lane.b32.xlu0 %v198, 112
    %v542 = vpop.permute.xlu0 %541
    %v543 = vsel %vm290, %v534, 0
    %v545 = vsel %vm290, %v536, 0
    %v547 = vsel %vm290, %v538, 0
    %v549 = vsel %vm290, %v540, 0
    %v551 = vsel %vm290, %v542, 0
    %553 = vmatprep.subr.mxu0 0.0
    %554 = vmatpush1.xpose.msra.mxu0 %v545
    %555 = vmatprep.subr.mxu0 0.0
    %556 = vmatpush1.xpose.msra.mxu0 %v547
    %557 = vmatprep.subr.mxu0 0.0
    %558 = vmatpush1.xpose.msra.mxu0 %v549
    %559 = vmatprep.subr.mxu0 0.0
    %560 = vmatpush1.xpose.msra.mxu0 %v551
    %561 = vmatprep.subr.mxu0 0.0
    %562 = vmatpush1.xpose.msra.mxu0 0.0
    %563 = vmatprep.subr.mxu0 0.0
    %564 = vmatpush1.xpose.msra.mxu0 0.0
    %565 = vmatprep.subr.mxu0 0.0
    %566 = vmatpush1.xpose.msra.mxu0 0.0
    %567 = vmatprep.subr.mxu0 0.0
    %568 = vmatpush1.xpose.msra.mxu0 0.0
    %569 = vmatprep.subr.mxu0 0.0
    %570 = vmatpush1.xpose.msra.mxu0 0.0
    %571 = vmatprep.subr.mxu0 0.0
    %572 = vmatpush1.xpose.msra.mxu0 0.0
    %573 = vmatprep.subr.mxu0 0.0
    %574 = vmatpush1.xpose.msra.mxu0 0.0
    %575 = vmatprep.subr.mxu0 0.0
    %576 = vmatpush1.xpose.msra.mxu0 0.0
    %577 = vmatprep.subr.mxu0 0.0
    %578 = vmatpush1.xpose.msra.mxu0 0.0
    %579 = vmatprep.subr.mxu0 0.0
    %580 = vmatpush1.xpose.msra.mxu0 0.0
    %581 = vmatprep.subr.mxu0 0.0
    %582 = vmatpush1.xpose.msra.mxu0 0.0
    %583 = vmatprep.subr.mxu0 0.0
    %584 = vmatpush1.xpose.msra.mxu0 0.0
    %585 = vmatprep.subr.mxu0 0.0
    %586 = vmatpush1.xpose.msra.mxu0 0.0
    %587 = vmatprep.subr.mxu0 0.0
    %588 = vmatpush1.xpose.msra.mxu0 0.0
    %589 = vmatprep.subr.mxu0 0.0
    %590 = vmatpush1.xpose.msra.mxu0 0.0
    %591 = vmatprep.subr.mxu0 0.0
    %592 = vmatpush1.xpose.msra.mxu0 0.0
    %593 = vmatprep.subr.mxu0 0.0
    %594 = vmatpush1.xpose.msra.mxu0 0.0
    %595 = vmatprep.subr.mxu0 0.0
    %596 = vmatpush1.xpose.msra.mxu0 0.0
    %597 = vmatprep.subr.mxu0 0.0
    %598 = vmatpush1.xpose.msra.mxu0 0.0
    %599 = vmatprep.subr.mxu0 0.0
    %600 = vmatpush1.xpose.msra.mxu0 0.0
    %601 = vmatprep.subr.mxu0 0.0
    %602 = vmatpush1.xpose.msra.mxu0 0.0
    %603 = vmatprep.subr.mxu0 0.0
    %604 = vmatpush1.xpose.msra.mxu0 0.0
    %605 = vmatprep.subr.mxu0 0.0
    %606 = vmatpush1.xpose.msra.mxu0 0.0
    %607 = vmatprep.subr.mxu0 0.0
    %608 = vmatpush1.xpose.msra.mxu0 0.0
    %609 = vmatprep.subr.mxu0 0.0
    %610 = vmatpush1.xpose.msra.mxu0 0.0
    %611 = vmatprep.subr.mxu0 0.0
    %612 = vmatpush1.xpose.msra.mxu0 0.0
    %613 = vmatprep.subr.mxu0 0.0
    %614 = vmatpush1.xpose.msra.mxu0 0.0
    %615 = vmatprep.subr.mxu0 0.0
    %616 = vmatpush1.xpose.msra.mxu0 0.0
    %617 = vmatprep.mubr.f32.mxu0 0.0
    %618 = vmatmul.mubr.f32.gmra.mrb[0].mxu0 %v543
    %v619 = vpop.f32.mrb[0].mxu0
    %v620 = vadd.f32 0.0, %v619
    %v621 = vpop.f32.mrb[0].mxu0
    %622 = vdwg.mxu0
    %v623 = vlaneseq
    %v624 = vshrl.u32 %v623, 7
    %v625 = vsub.s32 0, %v624
    %v626 = vrot.slane %v620, %v625
    %v627 = vadd.f32 %v529, %v626
    %v628 = vadd.f32 %v532, %v626
    %vm629 = vcmp.ge.f32.partialorder %v627, 0.0
    %vm630 = vcmp.ge.f32.partialorder %v628, 0.0
    %v631 = vmul.f32 %v627, 0.2
    %v632 = vmul.f32 %v628, 0.2
    %v633 = vsel %vm629, %v627, %v631
    %v634 = vsel %vm630, %v628, %v632
    %v635 = vsel %vm398, %v633, -1e+30
    %v636 = vsel %vm399, %v634, -1e+30
    %v637 = vsel %vm103, %v635, -inf
    %638 = vmax.xlane.f32.xlu0 %v637
    %v639 = vpop.xlane.xlu0 %638
    %v640 = vsel %vm103, %v636, -inf
    %641 = vmax.xlane.f32.xlu0 %v640
    %v642 = vpop.xlane.xlu0 %641
    %v643 = vsub.f32 %v635, %v639
    %v644 = vsub.f32 %v636, %v642
    %v645 = vmul.f32 %v643, 1.442695
    %v646 = vpow.pop %v645
    %v647 = vmul.f32 %v644, 1.442695
    %v648 = vpow.pop %v647
    %v649 = vmul.f32 %v646, %v94
    %v650 = vmul.f32 %v648, %v95
    %v651 = vsel %vm103, %v649, 0.0
    %652 = vadd.xlane.f32.xlu0 %v651
    %v653 = vpop.xlane.xlu0 %652
    %v654 = vsel %vm103, %v650, 0.0
    %655 = vadd.xlane.f32.xlu0 %v654
    %v656 = vpop.xlane.xlu0 %655
    %vm657 = vcmp.gt.f32.partialorder %v653, 0.0
    %vm658 = vcmp.gt.f32.partialorder %v656, 0.0
    %v659 = vsel %vm657, %v653, 1.0
    %v660 = vsel %vm658, %v656, 1.0
    %v661 = vrcp.pop %v659
    %v662 = vrcp.pop %v660
    %v663 = vmul.f32 %v649, %v661
    %v664 = vmul.f32 %v650, %v662
    %669 = vrot.lane.b32.xlu0 %v434, 112
    %v670 = vpop.permute.xlu0 %669
    %v673 = vsel %vm103, %v663, 0
    %v676 = vsel %vm103, %v664, 0
    %678 = vmatprep.subr.mxu0 0.0
    %679 = vmatpush1.msra.mxu0 %v536
    %680 = vmatprep.subr.mxu0 0.0
    %681 = vmatpush1.msra.mxu0 %v538
    %682 = vmatprep.subr.mxu0 0.0
    %683 = vmatpush1.msra.mxu0 %v540
    %684 = vmatprep.subr.mxu0 0.0
    %685 = vmatpush1.msra.mxu0 %v542
    %686 = vmatprep.subr.mxu0 0.0
    %687 = vmatpush1.msra.mxu0 0.0
    %688 = vmatprep.subr.mxu0 0.0
    %689 = vmatpush1.msra.mxu0 0.0
    %690 = vmatprep.subr.mxu0 0.0
    %691 = vmatpush1.msra.mxu0 0.0
    %692 = vmatprep.subr.mxu0 0.0
    %693 = vmatpush1.msra.mxu0 0.0
    %694 = vmatprep.subr.mxu0 0.0
    %695 = vmatpush1.msra.mxu0 0.0
    %696 = vmatprep.subr.mxu0 0.0
    %697 = vmatpush1.msra.mxu0 0.0
    %698 = vmatprep.subr.mxu0 0.0
    %699 = vmatpush1.msra.mxu0 0.0
    %700 = vmatprep.subr.mxu0 0.0
    %701 = vmatpush1.msra.mxu0 0.0
    %702 = vmatprep.subr.mxu0 0.0
    %703 = vmatpush1.msra.mxu0 0.0
    %704 = vmatprep.subr.mxu0 0.0
    %705 = vmatpush1.msra.mxu0 0.0
    %706 = vmatprep.subr.mxu0 0.0
    %707 = vmatpush1.msra.mxu0 0.0
    %708 = vmatprep.subr.mxu0 0.0
    %709 = vmatpush1.msra.mxu0 0.0
    %710 = vmatprep.subr.mxu0 0.0
    %711 = vmatpush1.msra.mxu0 0.0
    %712 = vmatprep.subr.mxu0 0.0
    %713 = vmatpush1.msra.mxu0 0.0
    %714 = vmatprep.subr.mxu0 0.0
    %715 = vmatpush1.msra.mxu0 0.0
    %716 = vmatprep.subr.mxu0 0.0
    %717 = vmatpush1.msra.mxu0 0.0
    %718 = vmatprep.subr.mxu0 0.0
    %719 = vmatpush1.msra.mxu0 0.0
    %720 = vmatprep.subr.mxu0 0.0
    %721 = vmatpush1.msra.mxu0 0.0
    %722 = vmatprep.subr.mxu0 0.0
    %723 = vmatpush1.msra.mxu0 0.0
    %724 = vmatprep.subr.mxu0 0.0
    %725 = vmatpush1.msra.mxu0 0.0
    %726 = vmatprep.subr.mxu0 0.0
    %727 = vmatpush1.msra.mxu0 0.0
    %728 = vmatprep.subr.mxu0 0.0
    %729 = vmatpush1.msra.mxu0 0.0
    %730 = vmatprep.subr.mxu0 0.0
    %731 = vmatpush1.msra.mxu0 0.0
    %732 = vmatprep.subr.mxu0 0.0
    %733 = vmatpush1.msra.mxu0 0.0
    %734 = vmatprep.subr.mxu0 0.0
    %735 = vmatpush1.msra.mxu0 0.0
    %736 = vmatprep.subr.mxu0 0.0
    %737 = vmatpush1.msra.mxu0 0.0
    %738 = vmatprep.subr.mxu0 0.0
    %739 = vmatpush1.msra.mxu0 0.0
    %740 = vmatprep.subr.mxu0 0.0
    %741 = vmatpush1.msra.mxu0 0.0
    %742 = vmatprep.mubr.f32.mxu0 0.0
    %743 = vmatmul.mubr.f32.gmra.mrb[0].mxu0 %v673
    %v744 = vpop.f32.mrb[0].mxu0
    %v745 = vadd.f32 %v670, %v744
    %v746 = vpop.f32.mrb[0].mxu0
    %747 = vmatprep.mubr.f32.mxu0 0.0
    %748 = vmatmul.mubr.f32.gmra.mrb[0].mxu0 %v676
    %v749 = vpop.f32.mrb[0].mxu0
    %v750 = vadd.f32 %v670, %v749
    %v751 = vpop.f32.mrb[0].mxu0
    %752 = vdwg.mxu0
    %755 = vrot.lane.b32.xlu0 %v745, 16
    %v756 = vpop.permute.xlu0 %755
    %757 = vrot.lane.b32.xlu0 %v750, 16
    %v758 = vpop.permute.xlu0 %757
    %vm761 = vcmask 261248
    %762 = vst.msk [vmem:[#allocation10] sm:$0xff] %vm761, %v756
    %763 = vst.msk [vmem:[#allocation10 + $0x8] sm:$0xff] %vm761, %v758
    %764 = vrot.lane.b32.xlu0 %v288, 96
    %v765 = vpop.permute.xlu0 %764
    %766 = vrot.lane.b32.xlu0 %v289, 96
    %v767 = vpop.permute.xlu0 %766
    %v770 = vsel %vm290, %v765, 0.0
    %771 = vadd.xlane.f32.xlu0 %v770
    %v772 = vpop.xlane.xlu0 %771
    %v773 = vsel %vm290, %v767, 0.0
    %774 = vadd.xlane.f32.xlu0 %v773
    %v775 = vpop.xlane.xlu0 %774
    %776 = vrot.lane.b32.xlu0 %v301, 96
    %v777 = vpop.permute.xlu0 %776
    %778 = vrot.lane.b32.xlu0 %v183, 96
    %v779 = vpop.permute.xlu0 %778
    %780 = vrot.lane.b32.xlu0 %v188, 96
    %v781 = vpop.permute.xlu0 %780
    %782 = vrot.lane.b32.xlu0 %v193, 96
    %v783 = vpop.permute.xlu0 %782
    %784 = vrot.lane.b32.xlu0 %v198, 96
    %v785 = vpop.permute.xlu0 %784
    %v786 = vsel %vm290, %v777, 0
    %v788 = vsel %vm290, %v779, 0
    %v790 = vsel %vm290, %v781, 0
    %v792 = vsel %vm290, %v783, 0
    %v794 = vsel %vm290, %v785, 0
    %796 = vmatprep.subr.mxu0 0.0
    %797 = vmatpush1.xpose.msra.mxu0 %v788
    %798 = vmatprep.subr.mxu0 0.0
    %799 = vmatpush1.xpose.msra.mxu0 %v790
    %800 = vmatprep.subr.mxu0 0.0
    %801 = vmatpush1.xpose.msra.mxu0 %v792
    %802 = vmatprep.subr.mxu0 0.0
    %803 = vmatpush1.xpose.msra.mxu0 %v794
    %804 = vmatprep.subr.mxu0 0.0
    %805 = vmatpush1.xpose.msra.mxu0 0.0
    %806 = vmatprep.subr.mxu0 0.0
    %807 = vmatpush1.xpose.msra.mxu0 0.0
    %808 = vmatprep.subr.mxu0 0.0
    %809 = vmatpush1.xpose.msra.mxu0 0.0
    %810 = vmatprep.subr.mxu0 0.0
    %811 = vmatpush1.xpose.msra.mxu0 0.0
    %812 = vmatprep.subr.mxu0 0.0
    %813 = vmatpush1.xpose.msra.mxu0 0.0
    %814 = vmatprep.subr.mxu0 0.0
    %815 = vmatpush1.xpose.msra.mxu0 0.0
    %816 = vmatprep.subr.mxu0 0.0
    %817 = vmatpush1.xpose.msra.mxu0 0.0
    %818 = vmatprep.subr.mxu0 0.0
    %819 = vmatpush1.xpose.msra.mxu0 0.0
    %820 = vmatprep.subr.mxu0 0.0
    %821 = vmatpush1.xpose.msra.mxu0 0.0
    %822 = vmatprep.subr.mxu0 0.0
    %823 = vmatpush1.xpose.msra.mxu0 0.0
    %824 = vmatprep.subr.mxu0 0.0
    %825 = vmatpush1.xpose.msra.mxu0 0.0
    %826 = vmatprep.subr.mxu0 0.0
    %827 = vmatpush1.xpose.msra.mxu0 0.0
    %828 = vmatprep.subr.mxu0 0.0
    %829 = vmatpush1.xpose.msra.mxu0 0.0
    %830 = vmatprep.subr.mxu0 0.0
    %831 = vmatpush1.xpose.msra.mxu0 0.0
    %832 = vmatprep.subr.mxu0 0.0
    %833 = vmatpush1.xpose.msra.mxu0 0.0
    %834 = vmatprep.subr.mxu0 0.0
    %835 = vmatpush1.xpose.msra.mxu0 0.0
    %836 = vmatprep.subr.mxu0 0.0
    %837 = vmatpush1.xpose.msra.mxu0 0.0
    %838 = vmatprep.subr.mxu0 0.0
    %839 = vmatpush1.xpose.msra.mxu0 0.0
    %840 = vmatprep.subr.mxu0 0.0
    %841 = vmatpush1.xpose.msra.mxu0 0.0
    %842 = vmatprep.subr.mxu0 0.0
    %843 = vmatpush1.xpose.msra.mxu0 0.0
    %844 = vmatprep.subr.mxu0 0.0
    %845 = vmatpush1.xpose.msra.mxu0 0.0
    %846 = vmatprep.subr.mxu0 0.0
    %847 = vmatpush1.xpose.msra.mxu0 0.0
    %848 = vmatprep.subr.mxu0 0.0
    %849 = vmatpush1.xpose.msra.mxu0 0.0
    %850 = vmatprep.subr.mxu0 0.0
    %851 = vmatpush1.xpose.msra.mxu0 0.0
    %852 = vmatprep.subr.mxu0 0.0
    %853 = vmatpush1.xpose.msra.mxu0 0.0
    %854 = vmatprep.subr.mxu0 0.0
    %855 = vmatpush1.xpose.msra.mxu0 0.0
    %856 = vmatprep.subr.mxu0 0.0
    %857 = vmatpush1.xpose.msra.mxu0 0.0
    %858 = vmatprep.subr.mxu0 0.0
    %859 = vmatpush1.xpose.msra.mxu0 0.0
    %860 = vmatprep.mubr.f32.mxu0 0.0
    %861 = vmatmul.mubr.f32.gmra.mrb[0].mxu0 %v786
    %v862 = vpop.f32.mrb[0].mxu0
    %v863 = vadd.f32 0.0, %v862
    %v864 = vpop.f32.mrb[0].mxu0
    %865 = vdwg.mxu0
    %v866 = vlaneseq
    %v867 = vshrl.u32 %v866, 7
    %v868 = vsub.s32 0, %v867
    %v869 = vrot.slane %v863, %v868
    %v870 = vadd.f32 %v772, %v869
    %v871 = vadd.f32 %v775, %v869
    %vm872 = vcmp.ge.f32.partialorder %v870, 0.0
    %vm873 = vcmp.ge.f32.partialorder %v871, 0.0
    %v874 = vmul.f32 %v870, 0.2
    %v875 = vmul.f32 %v871, 0.2
    %v876 = vsel %vm872, %v870, %v874
    %v877 = vsel %vm873, %v871, %v875
    %v878 = vsel %vm398, %v876, -1e+30
    %v879 = vsel %vm399, %v877, -1e+30
    %v880 = vsel %vm103, %v878, -inf
    %881 = vmax.xlane.f32.xlu0 %v880
    %v882 = vpop.xlane.xlu0 %881
    %v883 = vsel %vm103, %v879, -inf
    %884 = vmax.xlane.f32.xlu0 %v883
    %v885 = vpop.xlane.xlu0 %884
    %v886 = vsub.f32 %v878, %v882
    %v887 = vsub.f32 %v879, %v885
    %v888 = vmul.f32 %v886, 1.442695
    %v889 = vpow.pop %v888
    %v890 = vmul.f32 %v887, 1.442695
    %v891 = vpow.pop %v890
    %v892 = vmul.f32 %v889, %v94
    %v893 = vmul.f32 %v891, %v95
    %v894 = vsel %vm103, %v892, 0.0
    %895 = vadd.xlane.f32.xlu0 %v894
    %v896 = vpop.xlane.xlu0 %895
    %v897 = vsel %vm103, %v893, 0.0
    %898 = vadd.xlane.f32.xlu0 %v897
    %v899 = vpop.xlane.xlu0 %898
    %vm900 = vcmp.gt.f32.partialorder %v896, 0.0
    %vm901 = vcmp.gt.f32.partialorder %v899, 0.0
    %v902 = vsel %vm900, %v896, 1.0
    %v903 = vsel %vm901, %v899, 1.0
    %v904 = vrcp.pop %v902
    %v905 = vrcp.pop %v903
    %v906 = vmul.f32 %v892, %v904
    %v907 = vmul.f32 %v893, %v905
    %912 = vrot.lane.b32.xlu0 %v434, 96
    %v913 = vpop.permute.xlu0 %912
    %v916 = vsel %vm103, %v906, 0
    %v919 = vsel %vm103, %v907, 0
    %921 = vmatprep.subr.mxu0 0.0
    %922 = vmatpush1.msra.mxu0 %v779
    %923 = vmatprep.subr.mxu0 0.0
    %924 = vmatpush1.msra.mxu0 %v781
    %925 = vmatprep.subr.mxu0 0.0
    %926 = vmatpush1.msra.mxu0 %v783
    %927 = vmatprep.subr.mxu0 0.0
    %928 = vmatpush1.msra.mxu0 %v785
    %929 = vmatprep.subr.mxu0 0.0
    %930 = vmatpush1.msra.mxu0 0.0
    %931 = vmatprep.subr.mxu0 0.0
    %932 = vmatpush1.msra.mxu0 0.0
    %933 = vmatprep.subr.mxu0 0.0
    %934 = vmatpush1.msra.mxu0 0.0
    %935 = vmatprep.subr.mxu0 0.0
    %936 = vmatpush1.msra.mxu0 0.0
    %937 = vmatprep.subr.mxu0 0.0
    %938 = vmatpush1.msra.mxu0 0.0
    %939 = vmatprep.subr.mxu0 0.0
    %940 = vmatpush1.msra.mxu0 0.0
    %941 = vmatprep.subr.mxu0 0.0
    %942 = vmatpush1.msra.mxu0 0.0
    %943 = vmatprep.subr.mxu0 0.0
    %944 = vmatpush1.msra.mxu0 0.0
    %945 = vmatprep.subr.mxu0 0.0
    %946 = vmatpush1.msra.mxu0 0.0
    %947 = vmatprep.subr.mxu0 0.0
    %948 = vmatpush1.msra.mxu0 0.0
    %949 = vmatprep.subr.mxu0 0.0
    %950 = vmatpush1.msra.mxu0 0.0
    %951 = vmatprep.subr.mxu0 0.0
    %952 = vmatpush1.msra.mxu0 0.0
    %953 = vmatprep.subr.mxu0 0.0
    %954 = vmatpush1.msra.mxu0 0.0
    %955 = vmatprep.subr.mxu0 0.0
    %956 = vmatpush1.msra.mxu0 0.0
    %957 = vmatprep.subr.mxu0 0.0
    %958 = vmatpush1.msra.mxu0 0.0
    %959 = vmatprep.subr.mxu0 0.0
    %960 = vmatpush1.msra.mxu0 0.0
    %961 = vmatprep.subr.mxu0 0.0
    %962 = vmatpush1.msra.mxu0 0.0
    %963 = vmatprep.subr.mxu0 0.0
    %964 = vmatpush1.msra.mxu0 0.0
    %965 = vmatprep.subr.mxu0 0.0
    %966 = vmatpush1.msra.mxu0 0.0
    %967 = vmatprep.subr.mxu0 0.0
    %968 = vmatpush1.msra.mxu0 0.0
    %969 = vmatprep.subr.mxu0 0.0
    %970 = vmatpush1.msra.mxu0 0.0
    %971 = vmatprep.subr.mxu0 0.0
    %972 = vmatpush1.msra.mxu0 0.0
    %973 = vmatprep.subr.mxu0 0.0
    %974 = vmatpush1.msra.mxu0 0.0
    %975 = vmatprep.subr.mxu0 0.0
    %976 = vmatpush1.msra.mxu0 0.0
    %977 = vmatprep.subr.mxu0 0.0
    %978 = vmatpush1.msra.mxu0 0.0
    %979 = vmatprep.subr.mxu0 0.0
    %980 = vmatpush1.msra.mxu0 0.0
    %981 = vmatprep.subr.mxu0 0.0
    %982 = vmatpush1.msra.mxu0 0.0
    %983 = vmatprep.subr.mxu0 0.0
    %984 = vmatpush1.msra.mxu0 0.0
    %985 = vmatprep.mubr.f32.mxu0 0.0
    %986 = vmatmul.mubr.f32.gmra.mrb[0].mxu0 %v916
    %v987 = vpop.f32.mrb[0].mxu0
    %v988 = vadd.f32 %v913, %v987
    %v989 = vpop.f32.mrb[0].mxu0
    %990 = vmatprep.mubr.f32.mxu0 0.0
    %991 = vmatmul.mubr.f32.gmra.mrb[0].mxu0 %v919
    %v992 = vpop.f32.mrb[0].mxu0
    %v993 = vadd.f32 %v913, %v992
    %v994 = vpop.f32.mrb[0].mxu0
    %995 = vdwg.mxu0
    %998 = vrot.lane.b32.xlu0 %v988, 32
    %v999 = vpop.permute.xlu0 %998
    %1000 = vrot.lane.b32.xlu0 %v993, 32
    %v1001 = vpop.permute.xlu0 %1000
    %vm1004 = vcmask 392448
    %1005 = vst.msk [vmem:[#allocation10] sm:$0xff] %vm1004, %v999
    %1006 = vst.msk [vmem:[#allocation10 + $0x8] sm:$0xff] %vm1004, %v1001
    %1007 = vrot.lane.b32.xlu0 %v288, 80
    %v1008 = vpop.permute.xlu0 %1007
    %1009 = vrot.lane.b32.xlu0 %v289, 80
    %v1010 = vpop.permute.xlu0 %1009
    %v1013 = vsel %vm290, %v1008, 0.0
    %1014 = vadd.xlane.f32.xlu0 %v1013
    %v1015 = vpop.xlane.xlu0 %1014
    %v1016 = vsel %vm290, %v1010, 0.0
    %1017 = vadd.xlane.f32.xlu0 %v1016
    %v1018 = vpop.xlane.xlu0 %1017
    %1019 = vrot.lane.b32.xlu0 %v301, 80
    %v1020 = vpop.permute.xlu0 %1019
    %1021 = vrot.lane.b32.xlu0 %v183, 80
    %v1022 = vpop.permute.xlu0 %1021
    %1023 = vrot.lane.b32.xlu0 %v188, 80
    %v1024 = vpop.permute.xlu0 %1023
    %1025 = vrot.lane.b32.xlu0 %v193, 80
    %v1026 = vpop.permute.xlu0 %1025
    %1027 = vrot.lane.b32.xlu0 %v198, 80
    %v1028 = vpop.permute.xlu0 %1027
    %v1029 = vsel %vm290, %v1020, 0
    %v1031 = vsel %vm290, %v1022, 0
    %v1033 = vsel %vm290, %v1024, 0
    %v1035 = vsel %vm290, %v1026, 0
    %v1037 = vsel %vm290, %v1028, 0
    %1039 = vmatprep.subr.mxu0 0.0
    %1040 = vmatpush1.xpose.msra.mxu0 %v1031
    %1041 = vmatprep.subr.mxu0 0.0
    %1042 = vmatpush1.xpose.msra.mxu0 %v1033
    %1043 = vmatprep.subr.mxu0 0.0
    %1044 = vmatpush1.xpose.msra.mxu0 %v1035
    %1045 = vmatprep.subr.mxu0 0.0
    %1046 = vmatpush1.xpose.msra.mxu0 %v1037
    %1047 = vmatprep.subr.mxu0 0.0
    %1048 = vmatpush1.xpose.msra.mxu0 0.0
    %1049 = vmatprep.subr.mxu0 0.0
    %1050 = vmatpush1.xpose.msra.mxu0 0.0
    %1051 = vmatprep.subr.mxu0 0.0
    %1052 = vmatpush1.xpose.msra.mxu0 0.0
    %1053 = vmatprep.subr.mxu0 0.0
    %1054 = vmatpush1.xpose.msra.mxu0 0.0
    %1055 = vmatprep.subr.mxu0 0.0
    %1056 = vmatpush1.xpose.msra.mxu0 0.0
    %1057 = vmatprep.subr.mxu0 0.0
    %1058 = vmatpush1.xpose.msra.mxu0 0.0
    %1059 = vmatprep.subr.mxu0 0.0
    %1060 = vmatpush1.xpose.msra.mxu0 0.0
    %1061 = vmatprep.subr.mxu0 0.0
    %1062 = vmatpush1.xpose.msra.mxu0 0.0
    %1063 = vmatprep.subr.mxu0 0.0
    %1064 = vmatpush1.xpose.msra.mxu0 0.0
    %1065 = vmatprep.subr.mxu0 0.0
    %1066 = vmatpush1.xpose.msra.mxu0 0.0
    %1067 = vmatprep.subr.mxu0 0.0
    %1068 = vmatpush1.xpose.msra.mxu0 0.0
    %1069 = vmatprep.subr.mxu0 0.0
    %1070 = vmatpush1.xpose.msra.mxu0 0.0
    %1071 = vmatprep.subr.mxu0 0.0
    %1072 = vmatpush1.xpose.msra.mxu0 0.0
    %1073 = vmatprep.subr.mxu0 0.0
    %1074 = vmatpush1.xpose.msra.mxu0 0.0
    %1075 = vmatprep.subr.mxu0 0.0
    %1076 = vmatpush1.xpose.msra.mxu0 0.0
    %1077 = vmatprep.subr.mxu0 0.0
    %1078 = vmatpush1.xpose.msra.mxu0 0.0
    %1079 = vmatprep.subr.mxu0 0.0
    %1080 = vmatpush1.xpose.msra.mxu0 0.0
    %1081 = vmatprep.subr.mxu0 0.0
    %1082 = vmatpush1.xpose.msra.mxu0 0.0
    %1083 = vmatprep.subr.mxu0 0.0
    %1084 = vmatpush1.xpose.msra.mxu0 0.0
    %1085 = vmatprep.subr.mxu0 0.0
    %1086 = vmatpush1.xpose.msra.mxu0 0.0
    %1087 = vmatprep.subr.mxu0 0.0
    %1088 = vmatpush1.xpose.msra.mxu0 0.0
    %1089 = vmatprep.subr.mxu0 0.0
    %1090 = vmatpush1.xpose.msra.mxu0 0.0
    %1091 = vmatprep.subr.mxu0 0.0
    %1092 = vmatpush1.xpose.msra.mxu0 0.0
    %1093 = vmatprep.subr.mxu0 0.0
    %1094 = vmatpush1.xpose.msra.mxu0 0.0
    %1095 = vmatprep.subr.mxu0 0.0
    %1096 = vmatpush1.xpose.msra.mxu0 0.0
    %1097 = vmatprep.subr.mxu0 0.0
    %1098 = vmatpush1.xpose.msra.mxu0 0.0
    %1099 = vmatprep.subr.mxu0 0.0
    %1100 = vmatpush1.xpose.msra.mxu0 0.0
    %1101 = vmatprep.subr.mxu0 0.0
    %1102 = vmatpush1.xpose.msra.mxu0 0.0
    %1103 = vmatprep.mubr.f32.mxu0 0.0
    %1104 = vmatmul.mubr.f32.gmra.mrb[0].mxu0 %v1029
    %v1105 = vpop.f32.mrb[0].mxu0
    %v1106 = vadd.f32 0.0, %v1105
    %v1107 = vpop.f32.mrb[0].mxu0
    %1108 = vdwg.mxu0
    %v1109 = vlaneseq
    %v1110 = vshrl.u32 %v1109, 7
    %v1111 = vsub.s32 0, %v1110
    %v1112 = vrot.slane %v1106, %v1111
    %v1113 = vadd.f32 %v1015, %v1112
    %v1114 = vadd.f32 %v1018, %v1112
    %vm1115 = vcmp.ge.f32.partialorder %v1113, 0.0
    %vm1116 = vcmp.ge.f32.partialorder %v1114, 0.0
    %v1117 = vmul.f32 %v1113, 0.2
    %v1118 = vmul.f32 %v1114, 0.2
    %v1119 = vsel %vm1115, %v1113, %v1117
    %v1120 = vsel %vm1116, %v1114, %v1118
    %v1121 = vsel %vm398, %v1119, -1e+30
    %v1122 = vsel %vm399, %v1120, -1e+30
    %v1123 = vsel %vm103, %v1121, -inf
    %1124 = vmax.xlane.f32.xlu0 %v1123
    %v1125 = vpop.xlane.xlu0 %1124
    %v1126 = vsel %vm103, %v1122, -inf
    %1127 = vmax.xlane.f32.xlu0 %v1126
    %v1128 = vpop.xlane.xlu0 %1127
    %v1129 = vsub.f32 %v1121, %v1125
    %v1130 = vsub.f32 %v1122, %v1128
    %v1131 = vmul.f32 %v1129, 1.442695
    %v1132 = vpow.pop %v1131
    %v1133 = vmul.f32 %v1130, 1.442695
    %v1134 = vpow.pop %v1133
    %v1135 = vmul.f32 %v1132, %v94
    %v1136 = vmul.f32 %v1134, %v95
    %v1137 = vsel %vm103, %v1135, 0.0
    %1138 = vadd.xlane.f32.xlu0 %v1137
    %v1139 = vpop.xlane.xlu0 %1138
    %v1140 = vsel %vm103, %v1136, 0.0
    %1141 = vadd.xlane.f32.xlu0 %v1140
    %v1142 = vpop.xlane.xlu0 %1141
    %vm1143 = vcmp.gt.f32.partialorder %v1139, 0.0
    %vm1144 = vcmp.gt.f32.partialorder %v1142, 0.0
    %v1145 = vsel %vm1143, %v1139, 1.0
    %v1146 = vsel %vm1144, %v1142, 1.0
    %v1147 = vrcp.pop %v1145
    %v1148 = vrcp.pop %v1146
    %v1149 = vmul.f32 %v1135, %v1147
    %v1150 = vmul.f32 %v1136, %v1148
    %1155 = vrot.lane.b32.xlu0 %v434, 80
    %v1156 = vpop.permute.xlu0 %1155
    %v1159 = vsel %vm103, %v1149, 0
    %v1162 = vsel %vm103, %v1150, 0
    %1164 = vmatprep.subr.mxu0 0.0
    %1165 = vmatpush1.msra.mxu0 %v1022
    %1166 = vmatprep.subr.mxu0 0.0
    %1167 = vmatpush1.msra.mxu0 %v1024
    %1168 = vmatprep.subr.mxu0 0.0
    %1169 = vmatpush1.msra.mxu0 %v1026
    %1170 = vmatprep.subr.mxu0 0.0
    %1171 = vmatpush1.msra.mxu0 %v1028
    %1172 = vmatprep.subr.mxu0 0.0
    %1173 = vmatpush1.msra.mxu0 0.0
    %1174 = vmatprep.subr.mxu0 0.0
    %1175 = vmatpush1.msra.mxu0 0.0
    %1176 = vmatprep.subr.mxu0 0.0
    %1177 = vmatpush1.msra.mxu0 0.0
    %1178 = vmatprep.subr.mxu0 0.0
    %1179 = vmatpush1.msra.mxu0 0.0
    %1180 = vmatprep.subr.mxu0 0.0
    %1181 = vmatpush1.msra.mxu0 0.0
    %1182 = vmatprep.subr.mxu0 0.0
    %1183 = vmatpush1.msra.mxu0 0.0
    %1184 = vmatprep.subr.mxu0 0.0
    %1185 = vmatpush1.msra.mxu0 0.0
    %1186 = vmatprep.subr.mxu0 0.0
    %1187 = vmatpush1.msra.mxu0 0.0
    %1188 = vmatprep.subr.mxu0 0.0
    %1189 = vmatpush1.msra.mxu0 0.0
    %1190 = vmatprep.subr.mxu0 0.0
    %1191 = vmatpush1.msra.mxu0 0.0
    %1192 = vmatprep.subr.mxu0 0.0
    %1193 = vmatpush1.msra.mxu0 0.0
    %1194 = vmatprep.subr.mxu0 0.0
    %1195 = vmatpush1.msra.mxu0 0.0
    %1196 = vmatprep.subr.mxu0 0.0
    %1197 = vmatpush1.msra.mxu0 0.0
    %1198 = vmatprep.subr.mxu0 0.0
    %1199 = vmatpush1.msra.mxu0 0.0
    %1200 = vmatprep.subr.mxu0 0.0
    %1201 = vmatpush1.msra.mxu0 0.0
    %1202 = vmatprep.subr.mxu0 0.0
    %1203 = vmatpush1.msra.mxu0 0.0
    %1204 = vmatprep.subr.mxu0 0.0
    %1205 = vmatpush1.msra.mxu0 0.0
    %1206 = vmatprep.subr.mxu0 0.0
    %1207 = vmatpush1.msra.mxu0 0.0
    %1208 = vmatprep.subr.mxu0 0.0
    %1209 = vmatpush1.msra.mxu0 0.0
    %1210 = vmatprep.subr.mxu0 0.0
    %1211 = vmatpush1.msra.mxu0 0.0
    %1212 = vmatprep.subr.mxu0 0.0
    %1213 = vmatpush1.msra.mxu0 0.0
    %1214 = vmatprep.subr.mxu0 0.0
    %1215 = vmatpush1.msra.mxu0 0.0
    %1216 = vmatprep.subr.mxu0 0.0
    %1217 = vmatpush1.msra.mxu0 0.0
    %1218 = vmatprep.subr.mxu0 0.0
    %1219 = vmatpush1.msra.mxu0 0.0
    %1220 = vmatprep.subr.mxu0 0.0
    %1221 = vmatpush1.msra.mxu0 0.0
    %1222 = vmatprep.subr.mxu0 0.0
    %1223 = vmatpush1.msra.mxu0 0.0
    %1224 = vmatprep.subr.mxu0 0.0
    %1225 = vmatpush1.msra.mxu0 0.0
    %1226 = vmatprep.subr.mxu0 0.0
    %1227 = vmatpush1.msra.mxu0 0.0
    %1228 = vmatprep.mubr.f32.mxu0 0.0
    %1229 = vmatmul.mubr.f32.gmra.mrb[0].mxu0 %v1159
    %v1230 = vpop.f32.mrb[0].mxu0
    %v1231 = vadd.f32 %v1156, %v1230
    %v1232 = vpop.f32.mrb[0].mxu0
    %1233 = vmatprep.mubr.f32.mxu0 0.0
    %1234 = vmatmul.mubr.f32.gmra.mrb[0].mxu0 %v1162
    %v1235 = vpop.f32.mrb[0].mxu0
    %v1236 = vadd.f32 %v1156, %v1235
    %v1237 = vpop.f32.mrb[0].mxu0
    %1238 = vdwg.mxu0
    %1241 = vrot.lane.b32.xlu0 %v1231, 48
    %v1242 = vpop.permute.xlu0 %1241
    %1243 = vrot.lane.b32.xlu0 %v1236, 48
    %v1244 = vpop.permute.xlu0 %1243
    %vm1247 = vcmask 523648
    %1248 = vst.msk [vmem:[#allocation10] sm:$0xff] %vm1247, %v1242
    %1249 = vst.msk [vmem:[#allocation10 + $0x8] sm:$0xff] %vm1247, %v1244
    %v1250 = vld [vmem:[#allocation10] sm:$0xff]
    %v1251 = vld [vmem:[#allocation10 + $0x8] sm:$0xff]
    %vm1252 = vcmask 523264
    %v1253 = vsel %vm1252, %v1250, 0.0
    %v1254 = vsel %vm1252, %v1251, 0.0
    %v1255 = vadd.f32 %v1253, %v1254
    %v1256 = vrot.slane %v1255, 4
    %v1257 = vadd.f32 %v1255, %v1256
    %v1258 = vrot.slane %v1257, 2
    %v1259 = vadd.f32 %v1257, %v1258
    %v1260 = vrot.slane %v1259, 1
    %v1261 = vadd.f32 %v1259, %v1260
    %v1262 = vrcp.pop 16.0
    %v1263 = vmul.f32 %v1261, %v1262
    %v1264 = vsub.f32 %v1250, %v1263
    %v1265 = vsub.f32 %v1251, %v1263
    %v1266 = vmul.f32 %v1264, %v1264
    %v1267 = vmul.f32 %v1265, %v1265
    %v1268 = vsel %vm1252, %v1266, 0.0
    %v1269 = vsel %vm1252, %v1267, 0.0
    %v1270 = vadd.f32 %v1268, %v1269
    %v1271 = vrot.slane %v1270, 4
    %v1272 = vadd.f32 %v1270, %v1271
    %v1273 = vrot.slane %v1272, 2
    %v1274 = vadd.f32 %v1272, %v1273
    %v1275 = vrot.slane %v1274, 1
    %v1276 = vadd.f32 %v1274, %v1275
    %v1277 = vmul.f32 %v1276, %v1262
    %v1278 = vadd.f32 %v1277, 1e-05
    %v1279 = vrsqrt.pop %v1278
    %v1280 = vmul.f32 %v1264, %v1279
    %v1281 = vmul.f32 %v1265, %v1279
    %v1282 = vld [vmem:[%s7] sm:$0x1]
    %v1284 = vlaneseq
    %v1285 = vshrl.u32 %v1284, 7
    %v1286 = vsub.s32 0, %v1285
    %v1287 = vrot.slane %v1282, %v1286
    %v1289 = vmul.f32 %v1280, %v1287
    %v1290 = vmul.f32 %v1281, %v1287
    %v1291 = vld [vmem:[%s8] sm:$0x1]
    %v1293 = vlaneseq
    %v1294 = vshrl.u32 %v1293, 7
    %v1295 = vsub.s32 0, %v1294
    %v1296 = vrot.slane %v1291, %v1295
    %v1298 = vadd.f32 %v1289, %v1296
    %v1299 = vadd.f32 %v1290, %v1296
    %vm1300 = vcmp.gt.f32.partialorder %v1298, 0.0
    %vm1301 = vcmp.gt.f32.partialorder %v1299, 0.0
    %v1302 = vmin.f32 %v1298, 0.0
    %v1303 = vmin.f32 %v1299, 0.0
    %v1304 = vmul.f32 %v1302, 1.442695
    %v1305 = vpow.pop %v1304
    %v1306 = vmul.f32 %v1303, 1.442695
    %v1307 = vpow.pop %v1306
    %v1308 = vsub.f32 %v1305, 1.0
    %v1309 = vsub.f32 %v1307, 1.0
    %v1310 = vsel %vm1300, %v1298, %v1308
    %v1311 = vsel %vm1301, %v1299, %v1309
    %1312 = vst.msk [vmem:[#allocation10] sm:$0xff] %vm1252, %v1310
    %1313 = vst.msk [vmem:[#allocation10 + $0x8] sm:$0xff] %vm1252, %v1311
    // Predicated region
    $region54: #{tpu_custom_call.1} parent=1 // pred_check
      _
    $region55: #{tpu_custom_call.1} parent=1 // pred_check_branch
      %1315 = sbr.rel (0) target = $region57
    $region56: #{tpu_custom_call.1} parent=1 // pred_region
      %s1317 = ssub.s32 256, 256
      %1318 = vsyncadd [#allocation4], %s1317
      %s1319 = sshll.u32 [#allocation10], 4
      %s1320 = int_to_ptr.vmem [resolvable:$true] %s1319
      %1325 = dma.vmem_to_hbm [thread:$0]  %s1320, 256, %s9, [#allocation4], 128, 128, 8
    $region57: #{tpu_custom_call.1} parent=1 // pred_fallthru
      _
    // Predicated region
    $region58: #{tpu_custom_call.1} parent=1 // pred_check
      _
    $region59: #{tpu_custom_call.1} parent=1 // pred_check_branch
      %1327 = sbr.rel (0) target = $region61
    $region60: #{tpu_custom_call.1} parent=1 // pred_region
      %1328 = dma.done [#allocation4], 256
    $region61: #{tpu_custom_call.1} parent=1 // pred_fallthru
      _
    %1329 = vsyncpa [#allocation3], 1
    %1330 = vsyncpa [#allocation6], 1
    %1331 = vsyncpa [#allocation9], 1
    %1332 = vsyncpa [#allocation4], 1

</llo_original>
